<compile_context>
chip_gen: v5e
topology: v5e:2x2
jax: 0.10.0
libtpu: 0.0.40
codegen_flags: <defaults>
</compile_context>

<pallas_src>
import jax
import jax.numpy as jnp
import numpy as np
from jax import lax
from jax.experimental import pallas as pl
from jax.experimental.pallas import tpu as pltpu

# ------------------------- static shape constants ---------------------------
C1, C2 = 8, 8           # conv1 / conv2 output channels
H0, W0 = 28, 28         # input spatial
H1, W1 = 26, 26         # after conv1 (3x3, valid)
H1P, W1P = 13, 13       # after maxpool 2x2
H2, W2 = 11, 11         # after conv2 (3x3, valid)
H2P, W2P = 5, 5         # after maxpool 2x2 (floor)
FC1, FC2 = 64, 10
LANES = 128             # TPU lane width
NWIDE = 2 * LANES       # conv RHS width: even-pool cols in [0:128), odd in [128:256)


def _round_up(a, m):
    return (a + m - 1) // m * m


# ----------------------- host-side operand preparation ----------------------
def _shift_matrix(w_in, w_out):
    s = np.zeros((3, w_in, w_out), np.float32)
    for dj in range(3):
        for j in range(w_out):
            s[dj, j + dj, j] = 1.0
    return jnp.asarray(s)


def _conv_toeplitz(w, w_in, w_out):
    # w: (c_out, c_in, 3, 3) -> T: (3, c_in*w_in, c_out*w_out) with
    # T[dh][ci*w_in + wi, co*w_out + j] = w[co, ci, dh, wi - j] (0 <= wi-j <= 2).
    s = _shift_matrix(w_in, w_out)
    c_in = w.shape[1]
    t = jnp.einsum('oidk,kwj->diwoj', w, s, precision=lax.Precision.HIGHEST)
    return t.reshape(3, c_in * w_in, w.shape[0] * w_out)


def _permute_pad_cols(a, c, w, wp):
    # Route column (co, j) of a (..., c*w) array to:
    #   j = 2q   -> co*wp + q          (even half, lanes [0:128))
    #   j = 2q+1 -> 128 + co*wp + q    (odd half, lanes [128:256))
    # with q in [0, wp); columns j >= 2*wp are dropped; all other lanes are 0.
    old_e = np.array([co * w + 2 * q for co in range(c) for q in range(wp)])
    new_e = np.array([co * wp + q for co in range(c) for q in range(wp)])
    out = jnp.zeros(a.shape[:-1] + (NWIDE,), a.dtype)
    out = out.at[..., new_e].set(a[..., old_e])
    out = out.at[..., new_e + LANES].set(a[..., old_e + 1])
    return out


# ------------------------------- fused kernel -------------------------------
def fused_convnet_kernel(x_ref, t1_ref, b1_ref, t2_ref, b2_ref,
                         wf1_ref, bf1_ref, wf2_ref, bf2_ref, out_ref):
    f32, bf16 = jnp.float32, jnp.bfloat16
    B = x_ref.shape[1]

    # ---- conv1 + bias + ReLU: ONE wide-K (84) bf16 MXU matmul, N = 256 ----
    x = x_ref[...].reshape(H1 * B, 3 * W0)                        # (26B, 84) bf16
    y1 = jnp.dot(x, t1_ref[...], preferred_element_type=f32)      # (26B, 256) f32
    y1 = jnp.maximum(y1 + b1_ref[...], 0.0)

    # ---- maxpool 2x2 #1 (dropout1 = identity in eval) ----
    # Height: paired-row VPU max.  Width: even / odd conv columns were routed
    # to lane halves [0:128) / [128:256) host-side, so the width max is one
    # aligned half-vs-half VPU max (no selector matmuls, no lane shifts).
    y1 = y1.reshape(H1P, 2 * B, NWIDE)
    hm1 = jnp.maximum(y1[:, :B], y1[:, B:])                       # (13, B, 256)
    m1 = jnp.maximum(hm1[..., :LANES], hm1[..., LANES:]).astype(bf16)   # (13, B, 128)

    # ---- conv2 + bias + ReLU: 3 Toeplitz bf16 matmuls, K = 128, N = 256 ----
    # (pool1's even-column selection is already folded into t2's rows)
    y2 = jnp.dot(m1[0:H2].reshape(H2 * B, LANES), t2_ref[0],
                 preferred_element_type=f32)
    for dh in range(1, 3):
        y2 = y2 + jnp.dot(m1[dh:dh + H2].reshape(H2 * B, LANES), t2_ref[dh],
                          preferred_element_type=f32)
    y2 = jnp.maximum(y2 + b2_ref[...], 0.0)                       # (11B, 256) f32

    # ---- maxpool 2x2 #2, floor 11 -> 5 (dropout2 = identity in eval) ----
    y2 = y2[0:2 * H2P * B].reshape(H2P, 2 * B, NWIDE)
    hm2 = jnp.maximum(y2[:, :B], y2[:, B:])                       # (5, B, 256)
    m2 = jnp.maximum(hm2[..., :LANES], hm2[..., LANES:]).astype(bf16)   # (5, B, 128)

    # ---- fc1 + ReLU (rows reproduce torch.flatten's (c, h, w) order) ----
    acc = jnp.dot(m2[0], wf1_ref[0], preferred_element_type=f32)
    for hh in range(1, H2P):
        acc = acc + jnp.dot(m2[hh], wf1_ref[hh], preferred_element_type=f32)
    h1 = jnp.maximum(acc + bf1_ref[...], 0.0)                     # (B, 64) f32

    # ---- fc2 + log_softmax (lanes padded to 128; pad bias = -1e30) ----
    logits = jnp.dot(h1.astype(bf16), wf2_ref[...],
                     preferred_element_type=f32) + bf2_ref[...]   # (B, 128) f32
    z = logits - jnp.max(logits, axis=-1, keepdims=True)
    out_ref[...] = z - jnp.log(jnp.sum(jnp.exp(z), axis=-1, keepdims=True))


# --------------------------------- wrapper ----------------------------------
def convnet_forward(x, params, block_b=256):
    (w_c1, b_c1, w_c2, b_c2, w_f1, b_f1, w_f2, b_f2) = params
    n, c_in, h_in, w_in = x.shape
    if (c_in, h_in, w_in) != (1, H0, W0):
        raise ValueError("ConvNet expects (N, 1, 28, 28) inputs")
    bf16 = jnp.bfloat16

    # Batch tile: multiple of 16 (bf16 sublane packing) so in-kernel reshapes
    # that merge (H, B) -> H*B rows stay layout no-ops.
    B = min(_round_up(block_b, 16), _round_up(n, 16))
    if B > 16 and _round_up(n, B) == B:   # keep >= 2 grid steps for v7x megacore
        B = _round_up((B + 1) // 2, 16)
    n_pad = _round_up(n, B)
    assert B % 16 == 0 and n_pad % B == 0

    # (N,1,28,28) -> im2col (26, N_pad, 84) bf16: H_out leading, batch in
    # sublanes, [row h | row h+1 | row h+2] concatenated in lanes (conv1 K=84).
    xT = jnp.transpose(x.reshape(n, H0, W0), (1, 0, 2))           # (28, N, 28)
    x3 = jnp.concatenate([xT[0:H1], xT[1:H1 + 1], xT[2:H1 + 2]], axis=-1)
    if n_pad != n:
        x3 = jnp.pad(x3, ((0, 0), (0, n_pad - n), (0, 0)))
    x3 = x3.astype(bf16)                                          # (26, N_pad, 84)

    # --- host-precomputed, permuted / padded bf16 weights (loop-invariant) ---
    # conv1: stack the 3 per-dh Toeplitz blocks along K (one K=84 matmul).
    t1s = _conv_toeplitz(w_c1, W0, W1).reshape(3 * W0, C1 * W1)   # (84, 208)
    t1p = _permute_pad_cols(t1s, C1, W1, W1P).astype(bf16)        # (84, 256)
    b1p = _permute_pad_cols(jnp.repeat(b_c1, W1)[None, :], C1, W1, W1P)   # (1, 256)

    # conv2: rows padded 104 -> 128 (pool1 pad lanes are zero), cols permuted.
    t2 = _conv_toeplitz(w_c2, W1P, W2)                            # (3, 104, 88)
    t2p = _permute_pad_cols(t2, C2, W2, W2P)                      # (3, 104, 256)
    t2p = jnp.pad(t2p, ((0, 0), (0, LANES - C1 * W1P), (0, 0))).astype(bf16)  # (3,128,256)
    b2p = _permute_pad_cols(jnp.repeat(b_c2, W2)[None, :], C2, W2, W2P)   # (1, 256)

    # fc1: per-pooled-row weights (torch.flatten (c,h,w) order), rows 40 -> 128.
    wf1h = jnp.transpose(w_f1.reshape(FC1, C2, H2P, W2P),
                         (2, 1, 3, 0)).reshape(H2P, C2 * W2P, FC1)        # (5, 40, 64)
    wf1p = jnp.pad(wf1h, ((0, 0), (0, LANES - C2 * W2P), (0, 0))).astype(bf16)  # (5,128,64)
    bf1 = b_f1[None, :]                                           # (1, 64) f32

    # fc2: output lanes padded 10 -> 128; pad bias -1e30 so softmax ignores pads.
    wf2p = jnp.pad(w_f2.T, ((0, 0), (0, LANES - FC2))).astype(bf16)       # (64, 128)
    bf2p = jnp.concatenate(
        [b_f2, jnp.full((LANES - FC2,), -1e30, b_f2.dtype)])[None, :]     # (1, 128)

    def const_spec(a):
        return pl.BlockSpec(a.shape, lambda i: (0,) * a.ndim)

    out = pl.pallas_call(
        fused_convnet_kernel,
        out_shape=jax.ShapeDtypeStruct((n_pad, LANES), jnp.float32),
        grid=(n_pad // B,),
        in_specs=[
            pl.BlockSpec((H1, B, 3 * W0), lambda i: (0, i, 0)),
            const_spec(t1p), const_spec(b1p),
            const_spec(t2p), const_spec(b2p),
            const_spec(wf1p), const_spec(bf1),
            const_spec(wf2p), const_spec(bf2p),
        ],
        out_specs=pl.BlockSpec((B, LANES), lambda i: (i, 0)),
        compiler_params=pltpu.CompilerParams(
            dimension_semantics=("parallel",),
            vmem_limit_bytes=48 * 1024 * 1024),
    )(x3, t1p, b1p, t2p, b2p, wf1p, bf1, wf2p, bf2p)
    return out[:n, :FC2]


# ------------------------------ pure-JAX reference ---------------------------
def reference_forward(x, params):
    (w_c1, b_c1, w_c2, b_c2, w_f1, b_f1, w_f2, b_f2) = params
    hp = lax.Precision.HIGHEST
    y = lax.conv_general_dilated(x, w_c1, (1, 1), "VALID",
                                 dimension_numbers=("NCHW", "OIHW", "NCHW"),
                                 precision=hp) + b_c1[None, :, None, None]
    y = jnp.maximum(y, 0.0)
    y = lax.reduce_window(y, -jnp.inf, lax.max, (1, 1, 2, 2), (1, 1, 2, 2), "VALID")
    y = lax.conv_general_dilated(y, w_c2, (1, 1), "VALID",
                                 dimension_numbers=("NCHW", "OIHW", "NCHW"),
                                 precision=hp) + b_c2[None, :, None, None]
    y = jnp.maximum(y, 0.0)
    y = lax.reduce_window(y, -jnp.inf, lax.max, (1, 1, 2, 2), (1, 1, 2, 2), "VALID")
    y = y.reshape(y.shape[0], -1)
    y = jnp.maximum(jnp.dot(y, w_f1.T, precision=hp) + b_f1, 0.0)
    y = jnp.dot(y, w_f2.T, precision=hp) + b_f2
    return jax.nn.log_softmax(y, axis=-1)


# ------------------------------------ main -----------------------------------
if __name__ == "__main__":
    key = jax.random.PRNGKey(0)
    ks = jax.random.split(key, 9)
    # Deterministic synthetic parameters with the exact nn.Module shapes.
    params = (
        0.30 * jax.random.normal(ks[0], (8, 1, 3, 3), jnp.float32),   # conv1.weight
        0.10 * jax.random.normal(ks[1], (8,), jnp.float32),           # conv1.bias
        0.15 * jax.random.normal(ks[2], (8, 8, 3, 3), jnp.float32),   # conv2.weight
        0.10 * jax.random.normal(ks[3], (8,), jnp.float32),           # conv2.bias
        0.05 * jax.random.normal(ks[4], (64, 200), jnp.float32),      # fc1.weight
        0.05 * jax.random.normal(ks[5], (64,), jnp.float32),          # fc1.bias
        0.10 * jax.random.normal(ks[6], (10, 64), jnp.float32),       # fc2.weight
        0.05 * jax.random.normal(ks[7], (10,), jnp.float32),          # fc2.bias
    )
    x = jax.random.normal(ks[8], (2, 1, 28, 28), jnp.float32)         # NCHW input

    out = jax.block_until_ready(convnet_forward(x, params))
    ref = jax.block_until_ready(reference_forward(x, params))
    np.testing.assert_allclose(np.asarray(out), np.asarray(ref), rtol=5e-2, atol=5e-2)
    print("KERNEL_OK")
</pallas_src>

<mosaic_0001>
module attributes {stable_mosaic.version = 11 : i64} {
  func.func @fused_convnet_kernel(%arg0: i32, %arg1: memref<26x16x84xbf16, #tpu.memory_space<vmem>>, %arg2: memref<84x256xbf16, #tpu.memory_space<vmem>>, %arg3: memref<1x256xf32, #tpu.memory_space<vmem>>, %arg4: memref<3x128x256xbf16, #tpu.memory_space<vmem>>, %arg5: memref<1x256xf32, #tpu.memory_space<vmem>>, %arg6: memref<5x128x64xbf16, #tpu.memory_space<vmem>>, %arg7: memref<1x64xf32, #tpu.memory_space<vmem>>, %arg8: memref<64x128xbf16, #tpu.memory_space<vmem>>, %arg9: memref<1x128xf32, #tpu.memory_space<vmem>>, %arg10: memref<16x128xf32, #tpu.memory_space<vmem>>) attributes {dimension_semantics = [#tpu.dimension_semantics<parallel>], iteration_bounds = array<i64: 1>, scalar_prefetch = 0 : i64, scratch_operands = 0 : i64, tpu.core_type = #tpu.core_type<tc>, window_params = [{transform_indices = @transform_0, window_bounds = array<i64: 26, 16, 84>}, {pipeline_mode = #tpu.pipeline_mode<synchronous>, transform_indices = @transform_1, window_bounds = array<i64: 84, 256>}, {pipeline_mode = #tpu.pipeline_mode<synchronous>, transform_indices = @transform_2, window_bounds = array<i64: 1, 256>}, {pipeline_mode = #tpu.pipeline_mode<synchronous>, transform_indices = @transform_3, window_bounds = array<i64: 3, 128, 256>}, {pipeline_mode = #tpu.pipeline_mode<synchronous>, transform_indices = @transform_4, window_bounds = array<i64: 1, 256>}, {pipeline_mode = #tpu.pipeline_mode<synchronous>, transform_indices = @transform_5, window_bounds = array<i64: 5, 128, 64>}, {pipeline_mode = #tpu.pipeline_mode<synchronous>, transform_indices = @transform_6, window_bounds = array<i64: 1, 64>}, {pipeline_mode = #tpu.pipeline_mode<synchronous>, transform_indices = @transform_7, window_bounds = array<i64: 64, 128>}, {pipeline_mode = #tpu.pipeline_mode<synchronous>, transform_indices = @transform_8, window_bounds = array<i64: 1, 128>}, {transform_indices = @transform_9, window_bounds = array<i64: 16, 128>}]} {
    %c0 = arith.constant 0 : index
    %c0_0 = arith.constant 0 : index
    %c0_1 = arith.constant 0 : index
    %0 = vector.load %arg1[%c0, %c0_0, %c0_1] : memref<26x16x84xbf16, #tpu.memory_space<vmem>>, vector<26x16x84xbf16>
    %1 = vector.shape_cast %0 : vector<26x16x84xbf16> to vector<416x84xbf16>
    %c0_2 = arith.constant 0 : index
    %c0_3 = arith.constant 0 : index
    %2 = vector.load %arg2[%c0_2, %c0_3] : memref<84x256xbf16, #tpu.memory_space<vmem>>, vector<84x256xbf16>
    %cst = arith.constant dense<0.000000e+00> : vector<416x256xf32>
    %3 = tpu.matmul %1, %2, %cst {dimension_numbers = #tpu.dot_dimension_numbers<[1], [0], [0], [1], [0, 0, 1, 1], [], []>} : vector<416x84xbf16>, vector<84x256xbf16>, vector<416x256xf32> -> vector<416x256xf32>
    %c0_4 = arith.constant 0 : index
    %c0_5 = arith.constant 0 : index
    %4 = vector.load %arg3[%c0_4, %c0_5] : memref<1x256xf32, #tpu.memory_space<vmem>>, vector<1x256xf32>
    %5 = vector.broadcast %4 : vector<1x256xf32> to vector<416x256xf32>
    %6 = arith.addf %3, %5 : vector<416x256xf32>
    %cst_6 = arith.constant 0.000000e+00 : f32
    %7 = vector.broadcast %cst_6 : f32 to vector<416x256xf32>
    %8 = arith.maximumf %6, %7 : vector<416x256xf32>
    %9 = vector.shape_cast %8 : vector<416x256xf32> to vector<13x32x256xf32>
    %10 = vector.extract_strided_slice %9 {offsets = [0, 0, 0], sizes = [13, 16, 256], strides = [1, 1, 1]} : vector<13x32x256xf32> to vector<13x16x256xf32>
    %11 = vector.extract_strided_slice %9 {offsets = [0, 16, 0], sizes = [13, 16, 256], strides = [1, 1, 1]} : vector<13x32x256xf32> to vector<13x16x256xf32>
    %12 = arith.maximumf %10, %11 : vector<13x16x256xf32>
    %13 = vector.extract_strided_slice %12 {offsets = [0, 0, 0], sizes = [13, 16, 128], strides = [1, 1, 1]} : vector<13x16x256xf32> to vector<13x16x128xf32>
    %14 = vector.extract_strided_slice %12 {offsets = [0, 0, 128], sizes = [13, 16, 128], strides = [1, 1, 1]} : vector<13x16x256xf32> to vector<13x16x128xf32>
    %15 = arith.maximumf %13, %14 : vector<13x16x128xf32>
    %16 = arith.truncf %15 : vector<13x16x128xf32> to vector<13x16x128xbf16>
    %17 = vector.extract_strided_slice %16 {offsets = [0, 0, 0], sizes = [11, 16, 128], strides = [1, 1, 1]} : vector<13x16x128xbf16> to vector<11x16x128xbf16>
    %18 = vector.shape_cast %17 : vector<11x16x128xbf16> to vector<176x128xbf16>
    %c0_7 = arith.constant 0 : index
    %c0_8 = arith.constant 0 : index
    %c0_9 = arith.constant 0 : index
    %19 = vector.load %arg4[%c0_7, %c0_8, %c0_9] : memref<3x128x256xbf16, #tpu.memory_space<vmem>>, vector<1x128x256xbf16>
    %20 = vector.shape_cast %19 : vector<1x128x256xbf16> to vector<128x256xbf16>
    %cst_10 = arith.constant dense<0.000000e+00> : vector<176x256xf32>
    %21 = tpu.matmul %18, %20, %cst_10 {dimension_numbers = #tpu.dot_dimension_numbers<[1], [0], [0], [1], [0, 0, 1, 1], [], []>} : vector<176x128xbf16>, vector<128x256xbf16>, vector<176x256xf32> -> vector<176x256xf32>
    %22 = vector.extract_strided_slice %16 {offsets = [1, 0, 0], sizes = [11, 16, 128], strides = [1, 1, 1]} : vector<13x16x128xbf16> to vector<11x16x128xbf16>
    %23 = vector.shape_cast %22 : vector<11x16x128xbf16> to vector<176x128xbf16>
    %c1 = arith.constant 1 : index
    %c0_11 = arith.constant 0 : index
    %c0_12 = arith.constant 0 : index
    %24 = vector.load %arg4[%c1, %c0_11, %c0_12] : memref<3x128x256xbf16, #tpu.memory_space<vmem>>, vector<1x128x256xbf16>
    %25 = vector.shape_cast %24 : vector<1x128x256xbf16> to vector<128x256xbf16>
    %cst_13 = arith.constant dense<0.000000e+00> : vector<176x256xf32>
    %26 = tpu.matmul %23, %25, %cst_13 {dimension_numbers = #tpu.dot_dimension_numbers<[1], [0], [0], [1], [0, 0, 1, 1], [], []>} : vector<176x128xbf16>, vector<128x256xbf16>, vector<176x256xf32> -> vector<176x256xf32>
    %27 = arith.addf %21, %26 : vector<176x256xf32>
    %28 = vector.extract_strided_slice %16 {offsets = [2, 0, 0], sizes = [11, 16, 128], strides = [1, 1, 1]} : vector<13x16x128xbf16> to vector<11x16x128xbf16>
    %29 = vector.shape_cast %28 : vector<11x16x128xbf16> to vector<176x128xbf16>
    %c2 = arith.constant 2 : index
    %c0_14 = arith.constant 0 : index
    %c0_15 = arith.constant 0 : index
    %30 = vector.load %arg4[%c2, %c0_14, %c0_15] : memref<3x128x256xbf16, #tpu.memory_space<vmem>>, vector<1x128x256xbf16>
    %31 = vector.shape_cast %30 : vector<1x128x256xbf16> to vector<128x256xbf16>
    %cst_16 = arith.constant dense<0.000000e+00> : vector<176x256xf32>
    %32 = tpu.matmul %29, %31, %cst_16 {dimension_numbers = #tpu.dot_dimension_numbers<[1], [0], [0], [1], [0, 0, 1, 1], [], []>} : vector<176x128xbf16>, vector<128x256xbf16>, vector<176x256xf32> -> vector<176x256xf32>
    %33 = arith.addf %27, %32 : vector<176x256xf32>
    %c0_17 = arith.constant 0 : index
    %c0_18 = arith.constant 0 : index
    %34 = vector.load %arg5[%c0_17, %c0_18] : memref<1x256xf32, #tpu.memory_space<vmem>>, vector<1x256xf32>
    %35 = vector.broadcast %34 : vector<1x256xf32> to vector<176x256xf32>
    %36 = arith.addf %33, %35 : vector<176x256xf32>
    %cst_19 = arith.constant 0.000000e+00 : f32
    %37 = vector.broadcast %cst_19 : f32 to vector<176x256xf32>
    %38 = arith.maximumf %36, %37 : vector<176x256xf32>
    %39 = vector.extract_strided_slice %38 {offsets = [0, 0], sizes = [160, 256], strides = [1, 1]} : vector<176x256xf32> to vector<160x256xf32>
    %40 = vector.shape_cast %39 : vector<160x256xf32> to vector<5x32x256xf32>
    %41 = vector.extract_strided_slice %40 {offsets = [0, 0, 0], sizes = [5, 16, 256], strides = [1, 1, 1]} : vector<5x32x256xf32> to vector<5x16x256xf32>
    %42 = vector.extract_strided_slice %40 {offsets = [0, 16, 0], sizes = [5, 16, 256], strides = [1, 1, 1]} : vector<5x32x256xf32> to vector<5x16x256xf32>
    %43 = arith.maximumf %41, %42 : vector<5x16x256xf32>
    %44 = vector.extract_strided_slice %43 {offsets = [0, 0, 0], sizes = [5, 16, 128], strides = [1, 1, 1]} : vector<5x16x256xf32> to vector<5x16x128xf32>
    %45 = vector.extract_strided_slice %43 {offsets = [0, 0, 128], sizes = [5, 16, 128], strides = [1, 1, 1]} : vector<5x16x256xf32> to vector<5x16x128xf32>
    %46 = arith.maximumf %44, %45 : vector<5x16x128xf32>
    %47 = arith.truncf %46 : vector<5x16x128xf32> to vector<5x16x128xbf16>
    %48 = vector.extract_strided_slice %47 {offsets = [0, 0, 0], sizes = [1, 16, 128], strides = [1, 1, 1]} : vector<5x16x128xbf16> to vector<1x16x128xbf16>
    %49 = vector.shape_cast %48 : vector<1x16x128xbf16> to vector<16x128xbf16>
    %c0_20 = arith.constant 0 : index
    %c0_21 = arith.constant 0 : index
    %c0_22 = arith.constant 0 : index
    %50 = vector.load %arg6[%c0_20, %c0_21, %c0_22] : memref<5x128x64xbf16, #tpu.memory_space<vmem>>, vector<1x128x64xbf16>
    %51 = vector.shape_cast %50 : vector<1x128x64xbf16> to vector<128x64xbf16>
    %cst_23 = arith.constant dense<0.000000e+00> : vector<16x64xf32>
    %52 = tpu.matmul %49, %51, %cst_23 {dimension_numbers = #tpu.dot_dimension_numbers<[1], [0], [0], [1], [0, 0, 1, 1], [], []>} : vector<16x128xbf16>, vector<128x64xbf16>, vector<16x64xf32> -> vector<16x64xf32>
    %53 = vector.extract_strided_slice %47 {offsets = [1, 0, 0], sizes = [1, 16, 128], strides = [1, 1, 1]} : vector<5x16x128xbf16> to vector<1x16x128xbf16>
    %54 = vector.shape_cast %53 : vector<1x16x128xbf16> to vector<16x128xbf16>
    %c1_24 = arith.constant 1 : index
    %c0_25 = arith.constant 0 : index
    %c0_26 = arith.constant 0 : index
    %55 = vector.load %arg6[%c1_24, %c0_25, %c0_26] : memref<5x128x64xbf16, #tpu.memory_space<vmem>>, vector<1x128x64xbf16>
    %56 = vector.shape_cast %55 : vector<1x128x64xbf16> to vector<128x64xbf16>
    %cst_27 = arith.constant dense<0.000000e+00> : vector<16x64xf32>
    %57 = tpu.matmul %54, %56, %cst_27 {dimension_numbers = #tpu.dot_dimension_numbers<[1], [0], [0], [1], [0, 0, 1, 1], [], []>} : vector<16x128xbf16>, vector<128x64xbf16>, vector<16x64xf32> -> vector<16x64xf32>
    %58 = arith.addf %52, %57 : vector<16x64xf32>
    %59 = vector.extract_strided_slice %47 {offsets = [2, 0, 0], sizes = [1, 16, 128], strides = [1, 1, 1]} : vector<5x16x128xbf16> to vector<1x16x128xbf16>
    %60 = vector.shape_cast %59 : vector<1x16x128xbf16> to vector<16x128xbf16>
    %c2_28 = arith.constant 2 : index
    %c0_29 = arith.constant 0 : index
    %c0_30 = arith.constant 0 : index
    %61 = vector.load %arg6[%c2_28, %c0_29, %c0_30] : memref<5x128x64xbf16, #tpu.memory_space<vmem>>, vector<1x128x64xbf16>
    %62 = vector.shape_cast %61 : vector<1x128x64xbf16> to vector<128x64xbf16>
    %cst_31 = arith.constant dense<0.000000e+00> : vector<16x64xf32>
    %63 = tpu.matmul %60, %62, %cst_31 {dimension_numbers = #tpu.dot_dimension_numbers<[1], [0], [0], [1], [0, 0, 1, 1], [], []>} : vector<16x128xbf16>, vector<128x64xbf16>, vector<16x64xf32> -> vector<16x64xf32>
    %64 = arith.addf %58, %63 : vector<16x64xf32>
    %65 = vector.extract_strided_slice %47 {offsets = [3, 0, 0], sizes = [1, 16, 128], strides = [1, 1, 1]} : vector<5x16x128xbf16> to vector<1x16x128xbf16>
    %66 = vector.shape_cast %65 : vector<1x16x128xbf16> to vector<16x128xbf16>
    %c3 = arith.constant 3 : index
    %c0_32 = arith.constant 0 : index
    %c0_33 = arith.constant 0 : index
    %67 = vector.load %arg6[%c3, %c0_32, %c0_33] : memref<5x128x64xbf16, #tpu.memory_space<vmem>>, vector<1x128x64xbf16>
    %68 = vector.shape_cast %67 : vector<1x128x64xbf16> to vector<128x64xbf16>
    %cst_34 = arith.constant dense<0.000000e+00> : vector<16x64xf32>
    %69 = tpu.matmul %66, %68, %cst_34 {dimension_numbers = #tpu.dot_dimension_numbers<[1], [0], [0], [1], [0, 0, 1, 1], [], []>} : vector<16x128xbf16>, vector<128x64xbf16>, vector<16x64xf32> -> vector<16x64xf32>
    %70 = arith.addf %64, %69 : vector<16x64xf32>
    %71 = vector.extract_strided_slice %47 {offsets = [4, 0, 0], sizes = [1, 16, 128], strides = [1, 1, 1]} : vector<5x16x128xbf16> to vector<1x16x128xbf16>
    %72 = vector.shape_cast %71 : vector<1x16x128xbf16> to vector<16x128xbf16>
    %c4 = arith.constant 4 : index
    %c0_35 = arith.constant 0 : index
    %c0_36 = arith.constant 0 : index
    %73 = vector.load %arg6[%c4, %c0_35, %c0_36] : memref<5x128x64xbf16, #tpu.memory_space<vmem>>, vector<1x128x64xbf16>
    %74 = vector.shape_cast %73 : vector<1x128x64xbf16> to vector<128x64xbf16>
    %cst_37 = arith.constant dense<0.000000e+00> : vector<16x64xf32>
    %75 = tpu.matmul %72, %74, %cst_37 {dimension_numbers = #tpu.dot_dimension_numbers<[1], [0], [0], [1], [0, 0, 1, 1], [], []>} : vector<16x128xbf16>, vector<128x64xbf16>, vector<16x64xf32> -> vector<16x64xf32>
    %76 = arith.addf %70, %75 : vector<16x64xf32>
    %c0_38 = arith.constant 0 : index
    %c0_39 = arith.constant 0 : index
    %77 = vector.load %arg7[%c0_38, %c0_39] : memref<1x64xf32, #tpu.memory_space<vmem>>, vector<1x64xf32>
    %78 = vector.broadcast %77 : vector<1x64xf32> to vector<16x64xf32>
    %79 = arith.addf %76, %78 : vector<16x64xf32>
    %cst_40 = arith.constant 0.000000e+00 : f32
    %80 = vector.broadcast %cst_40 : f32 to vector<16x64xf32>
    %81 = arith.maximumf %79, %80 : vector<16x64xf32>
    %82 = arith.truncf %81 : vector<16x64xf32> to vector<16x64xbf16>
    %c0_41 = arith.constant 0 : index
    %c0_42 = arith.constant 0 : index
    %83 = vector.load %arg8[%c0_41, %c0_42] : memref<64x128xbf16, #tpu.memory_space<vmem>>, vector<64x128xbf16>
    %cst_43 = arith.constant dense<0.000000e+00> : vector<16x128xf32>
    %84 = tpu.matmul %82, %83, %cst_43 {dimension_numbers = #tpu.dot_dimension_numbers<[1], [0], [0], [1], [0, 0, 1, 1], [], []>} : vector<16x64xbf16>, vector<64x128xbf16>, vector<16x128xf32> -> vector<16x128xf32>
    %c0_44 = arith.constant 0 : index
    %c0_45 = arith.constant 0 : index
    %85 = vector.load %arg9[%c0_44, %c0_45] : memref<1x128xf32, #tpu.memory_space<vmem>>, vector<1x128xf32>
    %86 = vector.broadcast %85 : vector<1x128xf32> to vector<16x128xf32>
    %87 = arith.addf %84, %86 : vector<16x128xf32>
    %cst_46 = arith.constant dense<0xFF800000> : vector<16xf32>
    %88 = vector.multi_reduction <maximumf>, %87, %cst_46 [1] : vector<16x128xf32> to vector<16xf32>
    %89 = vector.shape_cast %88 : vector<16xf32> to vector<16x1xf32>
    %90 = vector.broadcast %89 : vector<16x1xf32> to vector<16x128xf32>
    %91 = arith.subf %87, %90 : vector<16x128xf32>
    %92 = math.exp %91 : vector<16x128xf32>
    %cst_47 = arith.constant dense<0.000000e+00> : vector<16xf32>
    %93 = vector.multi_reduction <add>, %92, %cst_47 [1] : vector<16x128xf32> to vector<16xf32>
    %94 = vector.shape_cast %93 : vector<16xf32> to vector<16x1xf32>
    %95 = math.log %94 : vector<16x1xf32>
    %96 = vector.broadcast %95 : vector<16x1xf32> to vector<16x128xf32>
    %97 = arith.subf %91, %96 : vector<16x128xf32>
    %c0_48 = arith.constant 0 : index
    %c0_49 = arith.constant 0 : index
    %98 = vector.load %arg10[%c0_48, %c0_49] : memref<16x128xf32, #tpu.memory_space<vmem>>, vector<16x128xf32>
    tpu.vector_store %arg10[%c0_48, %c0_49], %97 {strides = array<i32>} : memref<16x128xf32, #tpu.memory_space<vmem>>, vector<16x128xf32>,
    return
  }
  func.func @transform_0(%arg0: i32) -> (i32, i32, i32) {
    %c0_i32 = arith.constant 0 : i32
    %c0_i32_0 = arith.constant 0 : i32
    %c0_i32_1 = arith.constant 0 : i32
    return %c0_i32, %arg0, %c0_i32_0 : i32, i32, i32
  }
  func.func @transform_1(%arg0: i32) -> (i32, i32) {
    %c0_i32 = arith.constant 0 : i32
    %c0_i32_0 = arith.constant 0 : i32
    %c0_i32_1 = arith.constant 0 : i32
    return %c0_i32, %c0_i32_0 : i32, i32
  }
  func.func @transform_2(%arg0: i32) -> (i32, i32) {
    %c0_i32 = arith.constant 0 : i32
    %c0_i32_0 = arith.constant 0 : i32
    %c0_i32_1 = arith.constant 0 : i32
    return %c0_i32, %c0_i32_0 : i32, i32
  }
  func.func @transform_3(%arg0: i32) -> (i32, i32, i32) {
    %c0_i32 = arith.constant 0 : i32
    %c0_i32_0 = arith.constant 0 : i32
    %c0_i32_1 = arith.constant 0 : i32
    %c0_i32_2 = arith.constant 0 : i32
    return %c0_i32, %c0_i32_0, %c0_i32_1 : i32, i32, i32
  }
  func.func @transform_4(%arg0: i32) -> (i32, i32) {
    %c0_i32 = arith.constant 0 : i32
    %c0_i32_0 = arith.constant 0 : i32
    %c0_i32_1 = arith.constant 0 : i32
    return %c0_i32, %c0_i32_0 : i32, i32
  }
  func.func @transform_5(%arg0: i32) -> (i32, i32, i32) {
    %c0_i32 = arith.constant 0 : i32
    %c0_i32_0 = arith.constant 0 : i32
    %c0_i32_1 = arith.constant 0 : i32
    %c0_i32_2 = arith.constant 0 : i32
    return %c0_i32, %c0_i32_0, %c0_i32_1 : i32, i32, i32
  }
  func.func @transform_6(%arg0: i32) -> (i32, i32) {
    %c0_i32 = arith.constant 0 : i32
    %c0_i32_0 = arith.constant 0 : i32
    %c0_i32_1 = arith.constant 0 : i32
    return %c0_i32, %c0_i32_0 : i32, i32
  }
  func.func @transform_7(%arg0: i32) -> (i32, i32) {
    %c0_i32 = arith.constant 0 : i32
    %c0_i32_0 = arith.constant 0 : i32
    %c0_i32_1 = arith.constant 0 : i32
    return %c0_i32, %c0_i32_0 : i32, i32
  }
  func.func @transform_8(%arg0: i32) -> (i32, i32) {
    %c0_i32 = arith.constant 0 : i32
    %c0_i32_0 = arith.constant 0 : i32
    %c0_i32_1 = arith.constant 0 : i32
    return %c0_i32, %c0_i32_0 : i32, i32
  }
  func.func @transform_9(%arg0: i32) -> (i32, i32) {
    %c0_i32 = arith.constant 0 : i32
    %c0_i32_0 = arith.constant 0 : i32
    return %arg0, %c0_i32 : i32, i32
  }
}

</mosaic_0001>

<llo_original>
// kernel: tpu_custom_call.1
$region0: #{tpu_custom_call.1}
  #allocation0 [shape = 'u32[]', space=smem, size = 0x4, offset = 0x4, fixed_abs, tag = 'smem constant byte address 0x4 - core index']
  #allocation1 [shape = 'u32[72,128]{1,0:T(1,128)}', space=vmem, size = 0x9000, scoped, tag = 'internal scratch']
  %s0 = inlined_call_operand.hbm [shape: bf16[26,16,84], index: 0, kind: input, shape index: {}]
  %s1 = inlined_call_operand.vmem [shape: bf16[84,256], index: 1, kind: input, shape index: {}]
  %s2 = inlined_call_operand.vmem [shape: f32[1,256], index: 2, kind: input, shape index: {}]
  %s3 = inlined_call_operand.vmem [shape: bf16[3,128,256], index: 3, kind: input, shape index: {}]
  %s4 = inlined_call_operand.vmem [shape: f32[1,256], index: 4, kind: input, shape index: {}]
  %s5 = inlined_call_operand.vmem [shape: bf16[5,128,64], index: 5, kind: input, shape index: {}]
  %s6 = inlined_call_operand.vmem [shape: f32[1,64], index: 6, kind: input, shape index: {}]
  %s7 = inlined_call_operand.hbm [shape: bf16[64,128], index: 7, kind: input, shape index: {}]
  %s8 = inlined_call_operand.vmem [shape: f32[1,128], index: 8, kind: input, shape index: {}]
  %s9 = inlined_call_operand.hbm [shape: f32[16,128], index: 9, kind: output, shape index: {}]
  %s10 = sld [smem:[#allocation0]]
  $region54: #{tpu_custom_call.1} parent=0
    _
  %s12 = ssub.s32 1, %s10
  %s13 = scalar_select 0, %s12, %s10
  $region1: #{tpu_custom_call.1} parent=0
    #allocation2 [shape = 'u8[106496]{0}', space=vmem, size = 0x1a000, scoped, tag = 'input window, operand 0, single buffered']
    #allocation3 [shape = 's32[1]{0}', space=sflag, size = 0x4, scoped, tag = 'scoped memory for tpu_custom_call.1']
    #allocation4 [shape = 's32[1]{0}', space=sflag, size = 0x4, scoped, tag = 'scoped memory for tpu_custom_call.1']
    #allocation5 [shape = 'u8[16384]{0}', space=vmem, size = 0x4000, scoped, tag = 'input window, operand 7, single buffered']
    #allocation6 [shape = 's32[1]{0}', space=sflag, size = 0x4, scoped, tag = 'scoped memory for tpu_custom_call.1']
    #allocation7 [shape = 'u8[8192]{0}', space=vmem, size = 0x2000, scoped, tag = 'output window, operand 0, single buffered']
    %14 = vsyncpa [#allocation3], 0
    %15 = vsyncpa [#allocation6], 0
    %16 = vsyncpa [#allocation4], 0
    // Predicated region
    $region2: #{tpu_custom_call.1} parent=1 // pred_check
      _
    $region3: #{tpu_custom_call.1} parent=1 // pred_check_branch
      %18 = sbr.rel (0) target = $region5
    $region4: #{tpu_custom_call.1} parent=1 // pred_region
      %20 = vsyncadd [#allocation3], 0
      %s21 = sshll.u32 %s0, 4
      %s22 = int_to_ptr.hbm [resolvable:$true] %s21
      %s23 = sshll.u32 [#allocation2], 4
      %s24 = int_to_ptr.vmem [resolvable:$true] %s23
      %29 = dma.hbm_to_vmem [thread:$0]  %s22, 3328, %s24, [#allocation3], 64, 64, 4
    $region5: #{tpu_custom_call.1} parent=1 // pred_fallthru
      _
    // Predicated region
    $region6: #{tpu_custom_call.1} parent=1 // pred_check
      _
    $region7: #{tpu_custom_call.1} parent=1 // pred_check_branch
      %31 = sbr.rel (0) target = $region9
    $region8: #{tpu_custom_call.1} parent=1 // pred_region
      _
    $region9: #{tpu_custom_call.1} parent=1 // pred_fallthru
      _
    // Predicated region
    $region10: #{tpu_custom_call.1} parent=1 // pred_check
      _
    $region11: #{tpu_custom_call.1} parent=1 // pred_check_branch
      %33 = sbr.rel (0) target = $region13
    $region12: #{tpu_custom_call.1} parent=1 // pred_region
      _
    $region13: #{tpu_custom_call.1} parent=1 // pred_fallthru
      _
    // Predicated region
    $region14: #{tpu_custom_call.1} parent=1 // pred_check
      _
    $region15: #{tpu_custom_call.1} parent=1 // pred_check_branch
      %35 = sbr.rel (0) target = $region17
    $region16: #{tpu_custom_call.1} parent=1 // pred_region
      _
    $region17: #{tpu_custom_call.1} parent=1 // pred_fallthru
      _
    // Predicated region
    $region18: #{tpu_custom_call.1} parent=1 // pred_check
      _
    $region19: #{tpu_custom_call.1} parent=1 // pred_check_branch
      %37 = sbr.rel (0) target = $region21
    $region20: #{tpu_custom_call.1} parent=1 // pred_region
      _
    $region21: #{tpu_custom_call.1} parent=1 // pred_fallthru
      _
    // Predicated region
    $region22: #{tpu_custom_call.1} parent=1 // pred_check
      _
    $region23: #{tpu_custom_call.1} parent=1 // pred_check_branch
      %39 = sbr.rel (0) target = $region25
    $region24: #{tpu_custom_call.1} parent=1 // pred_region
      _
    $region25: #{tpu_custom_call.1} parent=1 // pred_fallthru
      _
    // Predicated region
    $region26: #{tpu_custom_call.1} parent=1 // pred_check
      _
    $region27: #{tpu_custom_call.1} parent=1 // pred_check_branch
      %41 = sbr.rel (0) target = $region29
    $region28: #{tpu_custom_call.1} parent=1 // pred_region
      _
    $region29: #{tpu_custom_call.1} parent=1 // pred_fallthru
      _
    // Predicated region
    $region30: #{tpu_custom_call.1} parent=1 // pred_check
      _
    $region31: #{tpu_custom_call.1} parent=1 // pred_check_branch
      %43 = sbr.rel (0) target = $region33
    $region32: #{tpu_custom_call.1} parent=1 // pred_region
      %45 = vsyncadd [#allocation6], 0
      %s46 = sshll.u32 %s7, 4
      %s47 = int_to_ptr.hbm [resolvable:$true] %s46
      %s48 = sshll.u32 [#allocation5], 4
      %s49 = int_to_ptr.vmem [resolvable:$true] %s48
      %54 = dma.hbm_to_vmem [thread:$0]  %s47, 512, %s49, [#allocation6], 64, 64, 4
    $region33: #{tpu_custom_call.1} parent=1 // pred_fallthru
      _
    // Predicated region
    $region34: #{tpu_custom_call.1} parent=1 // pred_check
      _
    $region35: #{tpu_custom_call.1} parent=1 // pred_check_branch
      %56 = sbr.rel (0) target = $region37
    $region36: #{tpu_custom_call.1} parent=1 // pred_region
      _
    $region37: #{tpu_custom_call.1} parent=1 // pred_fallthru
      _
    // Predicated region
    $region38: #{tpu_custom_call.1} parent=1 // pred_check
      _
    $region39: #{tpu_custom_call.1} parent=1 // pred_check_branch
      %58 = sbr.rel (0) target = $region41
    $region40: #{tpu_custom_call.1} parent=1 // pred_region
      %60 = dma.done [#allocation3], 3328
    $region41: #{tpu_custom_call.1} parent=1 // pred_fallthru
      _
    // Predicated region
    $region42: #{tpu_custom_call.1} parent=1 // pred_check
      _
    $region43: #{tpu_custom_call.1} parent=1 // pred_check_branch
      %62 = sbr.rel (0) target = $region45
    $region44: #{tpu_custom_call.1} parent=1 // pred_region
      %64 = dma.done [#allocation6], 512
    $region45: #{tpu_custom_call.1} parent=1 // pred_fallthru
      _
    %v66 = vld [vmem:[#allocation2] sm:$0xf]
    %v67 = vld [vmem:[#allocation2 + $0x4] sm:$0xf]
    %v68 = vld [vmem:[#allocation2 + $0x8] sm:$0xf]
    %v69 = vld [vmem:[#allocation2 + $0xc] sm:$0xf]
    %v70 = vld [vmem:[#allocation2 + $0x10] sm:$0xf]
    %v71 = vld [vmem:[#allocation2 + $0x14] sm:$0xf]
    %v72 = vld [vmem:[#allocation2 + $0x18] sm:$0xf]
    %v73 = vld [vmem:[#allocation2 + $0x1c] sm:$0xf]
    %v74 = vld [vmem:[#allocation2 + $0x20] sm:$0xf]
    %v75 = vld [vmem:[#allocation2 + $0x24] sm:$0xf]
    %v76 = vld [vmem:[#allocation2 + $0x28] sm:$0xf]
    %v77 = vld [vmem:[#allocation2 + $0x2c] sm:$0xf]
    %v78 = vld [vmem:[#allocation2 + $0x30] sm:$0xf]
    %v79 = vld [vmem:[#allocation2 + $0x34] sm:$0xf]
    %v80 = vld [vmem:[#allocation2 + $0x38] sm:$0xf]
    %v81 = vld [vmem:[#allocation2 + $0x3c] sm:$0xf]
    %v82 = vld [vmem:[#allocation2 + $0x40] sm:$0xf]
    %v83 = vld [vmem:[#allocation2 + $0x44] sm:$0xf]
    %v84 = vld [vmem:[#allocation2 + $0x48] sm:$0xf]
    %v85 = vld [vmem:[#allocation2 + $0x4c] sm:$0xf]
    %v86 = vld [vmem:[#allocation2 + $0x50] sm:$0xf]
    %v87 = vld [vmem:[#allocation2 + $0x54] sm:$0xf]
    %v88 = vld [vmem:[#allocation2 + $0x58] sm:$0xf]
    %v89 = vld [vmem:[#allocation2 + $0x5c] sm:$0xf]
    %v90 = vld [vmem:[#allocation2 + $0x60] sm:$0xf]
    %v91 = vld [vmem:[#allocation2 + $0x64] sm:$0xf]
    %v92 = vld [vmem:[#allocation2 + $0x68] sm:$0xf]
    %v93 = vld [vmem:[#allocation2 + $0x6c] sm:$0xf]
    %v94 = vld [vmem:[#allocation2 + $0x70] sm:$0xf]
    %v95 = vld [vmem:[#allocation2 + $0x74] sm:$0xf]
    %v96 = vld [vmem:[#allocation2 + $0x78] sm:$0xf]
    %v97 = vld [vmem:[#allocation2 + $0x7c] sm:$0xf]
    %v98 = vld [vmem:[#allocation2 + $0x80] sm:$0xf]
    %v99 = vld [vmem:[#allocation2 + $0x84] sm:$0xf]
    %v100 = vld [vmem:[#allocation2 + $0x88] sm:$0xf]
    %v101 = vld [vmem:[#allocation2 + $0x8c] sm:$0xf]
    %v102 = vld [vmem:[#allocation2 + $0x90] sm:$0xf]
    %v103 = vld [vmem:[#allocation2 + $0x94] sm:$0xf]
    %v104 = vld [vmem:[#allocation2 + $0x98] sm:$0xf]
    %v105 = vld [vmem:[#allocation2 + $0x9c] sm:$0xf]
    %v106 = vld [vmem:[#allocation2 + $0xa0] sm:$0xf]
    %v107 = vld [vmem:[#allocation2 + $0xa4] sm:$0xf]
    %v108 = vld [vmem:[#allocation2 + $0xa8] sm:$0xf]
    %v109 = vld [vmem:[#allocation2 + $0xac] sm:$0xf]
    %v110 = vld [vmem:[#allocation2 + $0xb0] sm:$0xf]
    %v111 = vld [vmem:[#allocation2 + $0xb4] sm:$0xf]
    %v112 = vld [vmem:[#allocation2 + $0xb8] sm:$0xf]
    %v113 = vld [vmem:[#allocation2 + $0xbc] sm:$0xf]
    %v114 = vld [vmem:[#allocation2 + $0xc0] sm:$0xf]
    %v115 = vld [vmem:[#allocation2 + $0xc4] sm:$0xf]
    %v116 = vld [vmem:[#allocation2 + $0xc8] sm:$0xf]
    %v117 = vld [vmem:[#allocation2 + $0xcc] sm:$0xf]
    %v118 = vld [vmem:[%s1] sm:$0xff]
    %v119 = vld [vmem:[%s1 + $0x8] sm:$0xff]
    %v120 = vld [vmem:[%s1 + $0x10] sm:$0xff]
    %v121 = vld [vmem:[%s1 + $0x18] sm:$0xff]
    %v122 = vld [vmem:[%s1 + $0x20] sm:$0xff]
    %v123 = vld [vmem:[%s1 + $0x28] sm:$0xff]
    %v124 = vld [vmem:[%s1 + $0x30] sm:$0xff]
    %v125 = vld [vmem:[%s1 + $0x38] sm:$0xff]
    %v126 = vld [vmem:[%s1 + $0x40] sm:$0xff]
    %v127 = vld [vmem:[%s1 + $0x48] sm:$0xff]
    %v128 = vld [vmem:[%s1 + $0x50] sm:$0x33]
    %v129 = vld [vmem:[%s2] sm:$0x3]
    %v131 = vperm.slane %v129, 0
    %v132 = vperm.slane %v129, 1
    %v187 = vunpack.c.l.b16 %v66
    %v188 = vunpack.c.l.b16 %v67
    %v189 = vunpack.c.l.b16 %v68
    %v190 = vunpack.c.l.b16 %v69
    %v191 = vunpack.c.l.b16 %v70
    %v192 = vunpack.c.l.b16 %v71
    %v193 = vunpack.c.l.b16 %v72
    %v194 = vunpack.c.l.b16 %v73
    %v195 = vunpack.c.l.b16 %v74
    %v196 = vunpack.c.l.b16 %v75
    %v197 = vunpack.c.l.b16 %v76
    %v198 = vunpack.c.l.b16 %v77
    %v199 = vunpack.c.l.b16 %v78
    %v200 = vunpack.c.l.b16 %v79
    %v201 = vunpack.c.l.b16 %v80
    %v202 = vunpack.c.l.b16 %v81
    %v203 = vunpack.c.l.b16 %v82
    %v204 = vunpack.c.l.b16 %v83
    %v205 = vunpack.c.l.b16 %v84
    %v206 = vunpack.c.l.b16 %v85
    %v207 = vunpack.c.l.b16 %v86
    %v208 = vunpack.c.l.b16 %v87
    %v209 = vunpack.c.l.b16 %v88
    %v210 = vunpack.c.l.b16 %v89
    %v211 = vunpack.c.l.b16 %v90
    %v212 = vunpack.c.l.b16 %v91
    %v213 = vunpack.c.l.b16 %v92
    %v214 = vunpack.c.l.b16 %v93
    %v215 = vunpack.c.l.b16 %v94
    %v216 = vunpack.c.l.b16 %v95
    %v217 = vunpack.c.l.b16 %v96
    %v218 = vunpack.c.l.b16 %v97
    %v219 = vunpack.c.l.b16 %v98
    %v220 = vunpack.c.l.b16 %v99
    %v221 = vunpack.c.l.b16 %v100
    %v222 = vunpack.c.l.b16 %v101
    %v223 = vunpack.c.l.b16 %v102
    %v224 = vunpack.c.l.b16 %v103
    %v225 = vunpack.c.l.b16 %v104
    %v226 = vunpack.c.l.b16 %v105
    %v227 = vunpack.c.l.b16 %v106
    %v228 = vunpack.c.l.b16 %v107
    %v229 = vunpack.c.l.b16 %v108
    %v230 = vunpack.c.l.b16 %v109
    %v231 = vunpack.c.l.b16 %v110
    %v232 = vunpack.c.l.b16 %v111
    %v233 = vunpack.c.l.b16 %v112
    %v234 = vunpack.c.l.b16 %v113
    %v235 = vunpack.c.l.b16 %v114
    %v236 = vunpack.c.l.b16 %v115
    %v237 = vunpack.c.l.b16 %v116
    %v238 = vunpack.c.l.b16 %v117
    %v239 = vpack.c.b16 %v188, %v187
    %v240 = vpack.c.b16 %v190, %v189
    %v241 = vpack.c.b16 %v192, %v191
    %v242 = vpack.c.b16 %v194, %v193
    %v243 = vpack.c.b16 %v196, %v195
    %v244 = vpack.c.b16 %v198, %v197
    %v245 = vpack.c.b16 %v200, %v199
    %v246 = vpack.c.b16 %v202, %v201
    %v247 = vpack.c.b16 %v204, %v203
    %v248 = vpack.c.b16 %v206, %v205
    %v249 = vpack.c.b16 %v208, %v207
    %v250 = vpack.c.b16 %v210, %v209
    %v251 = vpack.c.b16 %v212, %v211
    %v252 = vpack.c.b16 %v214, %v213
    %v253 = vpack.c.b16 %v216, %v215
    %v254 = vpack.c.b16 %v218, %v217
    %v255 = vpack.c.b16 %v220, %v219
    %v256 = vpack.c.b16 %v222, %v221
    %v257 = vpack.c.b16 %v224, %v223
    %v258 = vpack.c.b16 %v226, %v225
    %v259 = vpack.c.b16 %v228, %v227
    %v260 = vpack.c.b16 %v230, %v229
    %v261 = vpack.c.b16 %v232, %v231
    %v262 = vpack.c.b16 %v234, %v233
    %v263 = vpack.c.b16 %v236, %v235
    %v264 = vpack.c.b16 %v238, %v237
    %v276 = vunpack.c.l.b16 %v118
    %v277 = vunpack.c.h.b16 %v118
    %v278 = vunpack.c.l.b16 %v119
    %v279 = vunpack.c.h.b16 %v119
    %v280 = vunpack.c.l.b16 %v120
    %v281 = vunpack.c.h.b16 %v120
    %v282 = vunpack.c.l.b16 %v121
    %v283 = vunpack.c.h.b16 %v121
    %v284 = vunpack.c.l.b16 %v122
    %v285 = vunpack.c.h.b16 %v122
    %v286 = vunpack.c.l.b16 %v123
    %v287 = vunpack.c.h.b16 %v123
    %v288 = vunpack.c.l.b16 %v124
    %v289 = vunpack.c.h.b16 %v124
    %v290 = vunpack.c.l.b16 %v125
    %v291 = vunpack.c.h.b16 %v125
    %v292 = vunpack.c.l.b16 %v126
    %v293 = vunpack.c.h.b16 %v126
    %v294 = vunpack.c.l.b16 %v127
    %v295 = vunpack.c.h.b16 %v127
    %v296 = vunpack.c.l.b16 %v128
    %v297 = vunpack.c.h.b16 %v128
    %v298 = vpack.c.b16 %v278, %v276
    %v299 = vpack.c.b16 %v279, %v277
    %v300 = vpack.c.b16 %v282, %v280
    %v301 = vpack.c.b16 %v283, %v281
    %v302 = vpack.c.b16 %v286, %v284
    %v303 = vpack.c.b16 %v287, %v285
    %v304 = vpack.c.b16 %v290, %v288
    %v305 = vpack.c.b16 %v291, %v289
    %v306 = vpack.c.b16 %v294, %v292
    %v307 = vpack.c.b16 %v295, %v293
    %v308 = vpack.c.b16 %v296, %v296
    %v309 = vpack.c.b16 %v297, %v297
    %vm320 = vcmask 687104
    %v322 = vsel %vm320, %v239, 0
    %v325 = vsel %vm320, %v240, 0
    %v328 = vsel %vm320, %v241, 0
    %v331 = vsel %vm320, %v242, 0
    %v334 = vsel %vm320, %v243, 0
    %v337 = vsel %vm320, %v244, 0
    %v340 = vsel %vm320, %v245, 0
    %v343 = vsel %vm320, %v246, 0
    %v346 = vsel %vm320, %v247, 0
    %v349 = vsel %vm320, %v248, 0
    %v352 = vsel %vm320, %v249, 0
    %v355 = vsel %vm320, %v250, 0
    %v358 = vsel %vm320, %v251, 0
    %v361 = vsel %vm320, %v252, 0
    %v364 = vsel %vm320, %v253, 0
    %v367 = vsel %vm320, %v254, 0
    %v370 = vsel %vm320, %v255, 0
    %v373 = vsel %vm320, %v256, 0
    %v376 = vsel %vm320, %v257, 0
    %v379 = vsel %vm320, %v258, 0
    %v382 = vsel %vm320, %v259, 0
    %v385 = vsel %vm320, %v260, 0
    %v388 = vsel %vm320, %v261, 0
    %v391 = vsel %vm320, %v262, 0
    %v394 = vsel %vm320, %v263, 0
    %v397 = vsel %vm320, %v264, 0
    %vm399 = vcmask 1041408
    %v401 = vsel %vm399, %v308, 0
    %v404 = vsel %vm399, %v309, 0
    %406 = vmatpush.bf16.msra.mxu0 0
    %407 = vmatpush.bf16.msra.mxu0 0
    %408 = vmatpush.bf16.msra.mxu0 %v401
    %409 = vmatpush.bf16.msra.mxu0 %v306
    %410 = vmatpush.bf16.msra.mxu0 %v304
    %411 = vmatpush.bf16.msra.mxu0 %v302
    %412 = vmatpush.bf16.msra.mxu0 %v300
    %413 = vmatpush.bf16.msra.mxu0 %v298
    %414 = vmatmul.bf16.gmra.mxu0 %v322
    %v415 = vpop.f32.mrf.mxu0
    %v416 = vadd.f32 %v131, %v415
    %v417 = vpop.f32.mrf.mxu0
    %v418 = vadd.f32 %v131, %v417
    %419 = vmatmul.bf16.gmra.mxu0 %v325
    %v420 = vpop.f32.mrf.mxu0
    %v421 = vadd.f32 %v131, %v420
    %v422 = vpop.f32.mrf.mxu0
    %v423 = vadd.f32 %v131, %v422
    %424 = vmatmul.bf16.gmra.mxu0 %v328
    %v425 = vpop.f32.mrf.mxu0
    %v426 = vadd.f32 %v131, %v425
    %v427 = vpop.f32.mrf.mxu0
    %v428 = vadd.f32 %v131, %v427
    %429 = vmatmul.bf16.gmra.mxu0 %v331
    %v430 = vpop.f32.mrf.mxu0
    %v431 = vadd.f32 %v131, %v430
    %v432 = vpop.f32.mrf.mxu0
    %v433 = vadd.f32 %v131, %v432
    %434 = vmatmul.bf16.gmra.mxu0 %v334
    %v435 = vpop.f32.mrf.mxu0
    %v436 = vadd.f32 %v131, %v435
    %v437 = vpop.f32.mrf.mxu0
    %v438 = vadd.f32 %v131, %v437
    %439 = vmatmul.bf16.gmra.mxu0 %v337
    %v440 = vpop.f32.mrf.mxu0
    %v441 = vadd.f32 %v131, %v440
    %v442 = vpop.f32.mrf.mxu0
    %v443 = vadd.f32 %v131, %v442
    %444 = vmatmul.bf16.gmra.mxu0 %v340
    %v445 = vpop.f32.mrf.mxu0
    %v446 = vadd.f32 %v131, %v445
    %v447 = vpop.f32.mrf.mxu0
    %v448 = vadd.f32 %v131, %v447
    %449 = vmatmul.bf16.gmra.mxu0 %v343
    %v450 = vpop.f32.mrf.mxu0
    %v451 = vadd.f32 %v131, %v450
    %v452 = vpop.f32.mrf.mxu0
    %v453 = vadd.f32 %v131, %v452
    %454 = vmatmul.bf16.gmra.mxu0 %v346
    %v455 = vpop.f32.mrf.mxu0
    %v456 = vadd.f32 %v131, %v455
    %v457 = vpop.f32.mrf.mxu0
    %v458 = vadd.f32 %v131, %v457
    %459 = vmatmul.bf16.gmra.mxu0 %v349
    %v460 = vpop.f32.mrf.mxu0
    %v461 = vadd.f32 %v131, %v460
    %v462 = vpop.f32.mrf.mxu0
    %v463 = vadd.f32 %v131, %v462
    %464 = vmatmul.bf16.gmra.mxu0 %v352
    %v465 = vpop.f32.mrf.mxu0
    %v466 = vadd.f32 %v131, %v465
    %v467 = vpop.f32.mrf.mxu0
    %v468 = vadd.f32 %v131, %v467
    %469 = vmatmul.bf16.gmra.mxu0 %v355
    %v470 = vpop.f32.mrf.mxu0
    %v471 = vadd.f32 %v131, %v470
    %v472 = vpop.f32.mrf.mxu0
    %v473 = vadd.f32 %v131, %v472
    %474 = vmatmul.bf16.gmra.mxu0 %v358
    %v475 = vpop.f32.mrf.mxu0
    %v476 = vadd.f32 %v131, %v475
    %v477 = vpop.f32.mrf.mxu0
    %v478 = vadd.f32 %v131, %v477
    %479 = vmatmul.bf16.gmra.mxu0 %v361
    %v480 = vpop.f32.mrf.mxu0
    %v481 = vadd.f32 %v131, %v480
    %v482 = vpop.f32.mrf.mxu0
    %v483 = vadd.f32 %v131, %v482
    %484 = vmatmul.bf16.gmra.mxu0 %v364
    %v485 = vpop.f32.mrf.mxu0
    %v486 = vadd.f32 %v131, %v485
    %v487 = vpop.f32.mrf.mxu0
    %v488 = vadd.f32 %v131, %v487
    %489 = vmatmul.bf16.gmra.mxu0 %v367
    %v490 = vpop.f32.mrf.mxu0
    %v491 = vadd.f32 %v131, %v490
    %v492 = vpop.f32.mrf.mxu0
    %v493 = vadd.f32 %v131, %v492
    %494 = vmatmul.bf16.gmra.mxu0 %v370
    %v495 = vpop.f32.mrf.mxu0
    %v496 = vadd.f32 %v131, %v495
    %v497 = vpop.f32.mrf.mxu0
    %v498 = vadd.f32 %v131, %v497
    %499 = vmatmul.bf16.gmra.mxu0 %v373
    %v500 = vpop.f32.mrf.mxu0
    %v501 = vadd.f32 %v131, %v500
    %v502 = vpop.f32.mrf.mxu0
    %v503 = vadd.f32 %v131, %v502
    %504 = vmatmul.bf16.gmra.mxu0 %v376
    %v505 = vpop.f32.mrf.mxu0
    %v506 = vadd.f32 %v131, %v505
    %v507 = vpop.f32.mrf.mxu0
    %v508 = vadd.f32 %v131, %v507
    %509 = vmatmul.bf16.gmra.mxu0 %v379
    %v510 = vpop.f32.mrf.mxu0
    %v511 = vadd.f32 %v131, %v510
    %v512 = vpop.f32.mrf.mxu0
    %v513 = vadd.f32 %v131, %v512
    %514 = vmatmul.bf16.gmra.mxu0 %v382
    %v515 = vpop.f32.mrf.mxu0
    %v516 = vadd.f32 %v131, %v515
    %v517 = vpop.f32.mrf.mxu0
    %v518 = vadd.f32 %v131, %v517
    %519 = vmatmul.bf16.gmra.mxu0 %v385
    %v520 = vpop.f32.mrf.mxu0
    %v521 = vadd.f32 %v131, %v520
    %v522 = vpop.f32.mrf.mxu0
    %v523 = vadd.f32 %v131, %v522
    %524 = vmatmul.bf16.gmra.mxu0 %v388
    %v525 = vpop.f32.mrf.mxu0
    %v526 = vadd.f32 %v131, %v525
    %v527 = vpop.f32.mrf.mxu0
    %v528 = vadd.f32 %v131, %v527
    %529 = vmatmul.bf16.gmra.mxu0 %v391
    %v530 = vpop.f32.mrf.mxu0
    %v531 = vadd.f32 %v131, %v530
    %v532 = vpop.f32.mrf.mxu0
    %v533 = vadd.f32 %v131, %v532
    %534 = vmatmul.bf16.gmra.mxu0 %v394
    %v535 = vpop.f32.mrf.mxu0
    %v536 = vadd.f32 %v131, %v535
    %v537 = vpop.f32.mrf.mxu0
    %v538 = vadd.f32 %v131, %v537
    %539 = vmatmul.bf16.gmra.mxu0 %v397
    %v540 = vpop.f32.mrf.mxu0
    %v541 = vadd.f32 %v131, %v540
    %v542 = vpop.f32.mrf.mxu0
    %v543 = vadd.f32 %v131, %v542
    %544 = vdwg.mxu0
    %545 = vmatpush.bf16.msra.mxu0 0
    %546 = vmatpush.bf16.msra.mxu0 0
    %547 = vmatpush.bf16.msra.mxu0 %v404
    %548 = vmatpush.bf16.msra.mxu0 %v307
    %549 = vmatpush.bf16.msra.mxu0 %v305
    %550 = vmatpush.bf16.msra.mxu0 %v303
    %551 = vmatpush.bf16.msra.mxu0 %v301
    %552 = vmatpush.bf16.msra.mxu0 %v299
    %553 = vmatmul.bf16.gmra.mxu0 %v322
    %v554 = vpop.f32.mrf.mxu0
    %v555 = vadd.f32 %v132, %v554
    %v556 = vpop.f32.mrf.mxu0
    %v557 = vadd.f32 %v132, %v556
    %558 = vmatmul.bf16.gmra.mxu0 %v325
    %v559 = vpop.f32.mrf.mxu0
    %v560 = vadd.f32 %v132, %v559
    %v561 = vpop.f32.mrf.mxu0
    %v562 = vadd.f32 %v132, %v561
    %563 = vmatmul.bf16.gmra.mxu0 %v328
    %v564 = vpop.f32.mrf.mxu0
    %v565 = vadd.f32 %v132, %v564
    %v566 = vpop.f32.mrf.mxu0
    %v567 = vadd.f32 %v132, %v566
    %568 = vmatmul.bf16.gmra.mxu0 %v331
    %v569 = vpop.f32.mrf.mxu0
    %v570 = vadd.f32 %v132, %v569
    %v571 = vpop.f32.mrf.mxu0
    %v572 = vadd.f32 %v132, %v571
    %573 = vmatmul.bf16.gmra.mxu0 %v334
    %v574 = vpop.f32.mrf.mxu0
    %v575 = vadd.f32 %v132, %v574
    %v576 = vpop.f32.mrf.mxu0
    %v577 = vadd.f32 %v132, %v576
    %578 = vmatmul.bf16.gmra.mxu0 %v337
    %v579 = vpop.f32.mrf.mxu0
    %v580 = vadd.f32 %v132, %v579
    %v581 = vpop.f32.mrf.mxu0
    %v582 = vadd.f32 %v132, %v581
    %583 = vmatmul.bf16.gmra.mxu0 %v340
    %v584 = vpop.f32.mrf.mxu0
    %v585 = vadd.f32 %v132, %v584
    %v586 = vpop.f32.mrf.mxu0
    %v587 = vadd.f32 %v132, %v586
    %588 = vmatmul.bf16.gmra.mxu0 %v343
    %v589 = vpop.f32.mrf.mxu0
    %v590 = vadd.f32 %v132, %v589
    %v591 = vpop.f32.mrf.mxu0
    %v592 = vadd.f32 %v132, %v591
    %593 = vmatmul.bf16.gmra.mxu0 %v346
    %v594 = vpop.f32.mrf.mxu0
    %v595 = vadd.f32 %v132, %v594
    %v596 = vpop.f32.mrf.mxu0
    %v597 = vadd.f32 %v132, %v596
    %598 = vmatmul.bf16.gmra.mxu0 %v349
    %v599 = vpop.f32.mrf.mxu0
    %v600 = vadd.f32 %v132, %v599
    %v601 = vpop.f32.mrf.mxu0
    %v602 = vadd.f32 %v132, %v601
    %603 = vmatmul.bf16.gmra.mxu0 %v352
    %v604 = vpop.f32.mrf.mxu0
    %v605 = vadd.f32 %v132, %v604
    %v606 = vpop.f32.mrf.mxu0
    %v607 = vadd.f32 %v132, %v606
    %608 = vmatmul.bf16.gmra.mxu0 %v355
    %v609 = vpop.f32.mrf.mxu0
    %v610 = vadd.f32 %v132, %v609
    %v611 = vpop.f32.mrf.mxu0
    %v612 = vadd.f32 %v132, %v611
    %613 = vmatmul.bf16.gmra.mxu0 %v358
    %v614 = vpop.f32.mrf.mxu0
    %v615 = vadd.f32 %v132, %v614
    %v616 = vpop.f32.mrf.mxu0
    %v617 = vadd.f32 %v132, %v616
    %618 = vmatmul.bf16.gmra.mxu0 %v361
    %v619 = vpop.f32.mrf.mxu0
    %v620 = vadd.f32 %v132, %v619
    %v621 = vpop.f32.mrf.mxu0
    %v622 = vadd.f32 %v132, %v621
    %623 = vmatmul.bf16.gmra.mxu0 %v364
    %v624 = vpop.f32.mrf.mxu0
    %v625 = vadd.f32 %v132, %v624
    %v626 = vpop.f32.mrf.mxu0
    %v627 = vadd.f32 %v132, %v626
    %628 = vmatmul.bf16.gmra.mxu0 %v367
    %v629 = vpop.f32.mrf.mxu0
    %v630 = vadd.f32 %v132, %v629
    %v631 = vpop.f32.mrf.mxu0
    %v632 = vadd.f32 %v132, %v631
    %633 = vmatmul.bf16.gmra.mxu0 %v370
    %v634 = vpop.f32.mrf.mxu0
    %v635 = vadd.f32 %v132, %v634
    %v636 = vpop.f32.mrf.mxu0
    %v637 = vadd.f32 %v132, %v636
    %638 = vmatmul.bf16.gmra.mxu0 %v373
    %v639 = vpop.f32.mrf.mxu0
    %v640 = vadd.f32 %v132, %v639
    %v641 = vpop.f32.mrf.mxu0
    %v642 = vadd.f32 %v132, %v641
    %643 = vmatmul.bf16.gmra.mxu0 %v376
    %v644 = vpop.f32.mrf.mxu0
    %v645 = vadd.f32 %v132, %v644
    %v646 = vpop.f32.mrf.mxu0
    %v647 = vadd.f32 %v132, %v646
    %648 = vmatmul.bf16.gmra.mxu0 %v379
    %v649 = vpop.f32.mrf.mxu0
    %v650 = vadd.f32 %v132, %v649
    %v651 = vpop.f32.mrf.mxu0
    %v652 = vadd.f32 %v132, %v651
    %653 = vmatmul.bf16.gmra.mxu0 %v382
    %v654 = vpop.f32.mrf.mxu0
    %v655 = vadd.f32 %v132, %v654
    %v656 = vpop.f32.mrf.mxu0
    %v657 = vadd.f32 %v132, %v656
    %658 = vmatmul.bf16.gmra.mxu0 %v385
    %v659 = vpop.f32.mrf.mxu0
    %v660 = vadd.f32 %v132, %v659
    %v661 = vpop.f32.mrf.mxu0
    %v662 = vadd.f32 %v132, %v661
    %663 = vmatmul.bf16.gmra.mxu0 %v388
    %v664 = vpop.f32.mrf.mxu0
    %v665 = vadd.f32 %v132, %v664
    %v666 = vpop.f32.mrf.mxu0
    %v667 = vadd.f32 %v132, %v666
    %668 = vmatmul.bf16.gmra.mxu0 %v391
    %v669 = vpop.f32.mrf.mxu0
    %v670 = vadd.f32 %v132, %v669
    %v671 = vpop.f32.mrf.mxu0
    %v672 = vadd.f32 %v132, %v671
    %673 = vmatmul.bf16.gmra.mxu0 %v394
    %v674 = vpop.f32.mrf.mxu0
    %v675 = vadd.f32 %v132, %v674
    %v676 = vpop.f32.mrf.mxu0
    %v677 = vadd.f32 %v132, %v676
    %678 = vmatmul.bf16.gmra.mxu0 %v397
    %v679 = vpop.f32.mrf.mxu0
    %v680 = vadd.f32 %v132, %v679
    %v681 = vpop.f32.mrf.mxu0
    %v682 = vadd.f32 %v132, %v681
    %683 = vdwg.mxu0
    %v684 = vmax.f32 %v416, 0.0
    %v685 = vmax.f32 %v555, 0.0
    %v686 = vmax.f32 %v418, 0.0
    %v687 = vmax.f32 %v557, 0.0
    %v688 = vmax.f32 %v421, 0.0
    %v689 = vmax.f32 %v560, 0.0
    %v690 = vmax.f32 %v423, 0.0
    %v691 = vmax.f32 %v562, 0.0
    %v692 = vmax.f32 %v426, 0.0
    %v693 = vmax.f32 %v565, 0.0
    %v694 = vmax.f32 %v428, 0.0
    %v695 = vmax.f32 %v567, 0.0
    %v696 = vmax.f32 %v431, 0.0
    %v697 = vmax.f32 %v570, 0.0
    %v698 = vmax.f32 %v433, 0.0
    %v699 = vmax.f32 %v572, 0.0
    %v700 = vmax.f32 %v436, 0.0
    %v701 = vmax.f32 %v575, 0.0
    %v702 = vmax.f32 %v438, 0.0
    %v703 = vmax.f32 %v577, 0.0
    %v704 = vmax.f32 %v441, 0.0
    %v705 = vmax.f32 %v580, 0.0
    %v706 = vmax.f32 %v443, 0.0
    %v707 = vmax.f32 %v582, 0.0
    %v708 = vmax.f32 %v446, 0.0
    %v709 = vmax.f32 %v585, 0.0
    %v710 = vmax.f32 %v448, 0.0
    %v711 = vmax.f32 %v587, 0.0
    %v712 = vmax.f32 %v451, 0.0
    %v713 = vmax.f32 %v590, 0.0
    %v714 = vmax.f32 %v453, 0.0
    %v715 = vmax.f32 %v592, 0.0
    %v716 = vmax.f32 %v456, 0.0
    %v717 = vmax.f32 %v595, 0.0
    %v718 = vmax.f32 %v458, 0.0
    %v719 = vmax.f32 %v597, 0.0
    %v720 = vmax.f32 %v461, 0.0
    %v721 = vmax.f32 %v600, 0.0
    %v722 = vmax.f32 %v463, 0.0
    %v723 = vmax.f32 %v602, 0.0
    %v724 = vmax.f32 %v466, 0.0
    %v725 = vmax.f32 %v605, 0.0
    %v726 = vmax.f32 %v468, 0.0
    %v727 = vmax.f32 %v607, 0.0
    %v728 = vmax.f32 %v471, 0.0
    %v729 = vmax.f32 %v610, 0.0
    %v730 = vmax.f32 %v473, 0.0
    %v731 = vmax.f32 %v612, 0.0
    %v732 = vmax.f32 %v476, 0.0
    %v733 = vmax.f32 %v615, 0.0
    %v734 = vmax.f32 %v478, 0.0
    %v735 = vmax.f32 %v617, 0.0
    %v736 = vmax.f32 %v481, 0.0
    %v737 = vmax.f32 %v620, 0.0
    %v738 = vmax.f32 %v483, 0.0
    %v739 = vmax.f32 %v622, 0.0
    %v740 = vmax.f32 %v486, 0.0
    %v741 = vmax.f32 %v625, 0.0
    %v742 = vmax.f32 %v488, 0.0
    %v743 = vmax.f32 %v627, 0.0
    %v744 = vmax.f32 %v491, 0.0
    %v745 = vmax.f32 %v630, 0.0
    %v746 = vmax.f32 %v493, 0.0
    %v747 = vmax.f32 %v632, 0.0
    %v748 = vmax.f32 %v496, 0.0
    %v749 = vmax.f32 %v635, 0.0
    %v750 = vmax.f32 %v498, 0.0
    %v751 = vmax.f32 %v637, 0.0
    %v752 = vmax.f32 %v501, 0.0
    %v753 = vmax.f32 %v640, 0.0
    %v754 = vmax.f32 %v503, 0.0
    %v755 = vmax.f32 %v642, 0.0
    %v756 = vmax.f32 %v506, 0.0
    %v757 = vmax.f32 %v645, 0.0
    %v758 = vmax.f32 %v508, 0.0
    %v759 = vmax.f32 %v647, 0.0
    %v760 = vmax.f32 %v511, 0.0
    %v761 = vmax.f32 %v650, 0.0
    %v762 = vmax.f32 %v513, 0.0
    %v763 = vmax.f32 %v652, 0.0
    %v764 = vmax.f32 %v516, 0.0
    %v765 = vmax.f32 %v655, 0.0
    %v766 = vmax.f32 %v518, 0.0
    %v767 = vmax.f32 %v657, 0.0
    %v768 = vmax.f32 %v521, 0.0
    %v769 = vmax.f32 %v660, 0.0
    %v770 = vmax.f32 %v523, 0.0
    %v771 = vmax.f32 %v662, 0.0
    %v772 = vmax.f32 %v526, 0.0
    %v773 = vmax.f32 %v665, 0.0
    %v774 = vmax.f32 %v528, 0.0
    %v775 = vmax.f32 %v667, 0.0
    %v776 = vmax.f32 %v531, 0.0
    %v777 = vmax.f32 %v670, 0.0
    %v778 = vmax.f32 %v533, 0.0
    %v779 = vmax.f32 %v672, 0.0
    %v780 = vmax.f32 %v536, 0.0
    %v781 = vmax.f32 %v675, 0.0
    %v782 = vmax.f32 %v538, 0.0
    %v783 = vmax.f32 %v677, 0.0
    %v784 = vmax.f32 %v541, 0.0
    %v785 = vmax.f32 %v680, 0.0
    %v786 = vmax.f32 %v543, 0.0
    %v787 = vmax.f32 %v682, 0.0
    %v788 = vmax.f32 %v684, %v688
    %v789 = vmax.f32 %v685, %v689
    %v790 = vmax.f32 %v686, %v690
    %v791 = vmax.f32 %v687, %v691
    %v792 = vmax.f32 %v692, %v696
    %v793 = vmax.f32 %v693, %v697
    %v794 = vmax.f32 %v694, %v698
    %v795 = vmax.f32 %v695, %v699
    %v796 = vmax.f32 %v700, %v704
    %v797 = vmax.f32 %v701, %v705
    %v798 = vmax.f32 %v702, %v706
    %v799 = vmax.f32 %v703, %v707
    %v800 = vmax.f32 %v708, %v712
    %v801 = vmax.f32 %v709, %v713
    %v802 = vmax.f32 %v710, %v714
    %v803 = vmax.f32 %v711, %v715
    %v804 = vmax.f32 %v716, %v720
    %v805 = vmax.f32 %v717, %v721
    %v806 = vmax.f32 %v718, %v722
    %v807 = vmax.f32 %v719, %v723
    %v808 = vmax.f32 %v724, %v728
    %v809 = vmax.f32 %v725, %v729
    %v810 = vmax.f32 %v726, %v730
    %v811 = vmax.f32 %v727, %v731
    %v812 = vmax.f32 %v732, %v736
    %v813 = vmax.f32 %v733, %v737
    %v814 = vmax.f32 %v734, %v738
    %v815 = vmax.f32 %v735, %v739
    %v816 = vmax.f32 %v740, %v744
    %v817 = vmax.f32 %v741, %v745
    %v818 = vmax.f32 %v742, %v746
    %v819 = vmax.f32 %v743, %v747
    %v820 = vmax.f32 %v748, %v752
    %v821 = vmax.f32 %v749, %v753
    %v822 = vmax.f32 %v750, %v754
    %v823 = vmax.f32 %v751, %v755
    %v824 = vmax.f32 %v756, %v760
    %v825 = vmax.f32 %v757, %v761
    %v826 = vmax.f32 %v758, %v762
    %v827 = vmax.f32 %v759, %v763
    %v828 = vmax.f32 %v764, %v768
    %v829 = vmax.f32 %v765, %v769
    %v830 = vmax.f32 %v766, %v770
    %v831 = vmax.f32 %v767, %v771
    %v832 = vmax.f32 %v772, %v776
    %v833 = vmax.f32 %v773, %v777
    %v834 = vmax.f32 %v774, %v778
    %v835 = vmax.f32 %v775, %v779
    %v836 = vmax.f32 %v780, %v784
    %v837 = vmax.f32 %v781, %v785
    %v838 = vmax.f32 %v782, %v786
    %v839 = vmax.f32 %v783, %v787
    %v840 = vmax.f32 %v788, %v789
    %v841 = vmax.f32 %v790, %v791
    %v842 = vmax.f32 %v792, %v793
    %v843 = vmax.f32 %v794, %v795
    %v844 = vmax.f32 %v796, %v797
    %v845 = vmax.f32 %v798, %v799
    %v846 = vmax.f32 %v800, %v801
    %v847 = vmax.f32 %v802, %v803
    %v848 = vmax.f32 %v804, %v805
    %v849 = vmax.f32 %v806, %v807
    %v850 = vmax.f32 %v808, %v809
    %v851 = vmax.f32 %v810, %v811
    %v852 = vmax.f32 %v812, %v813
    %v853 = vmax.f32 %v814, %v815
    %v854 = vmax.f32 %v816, %v817
    %v855 = vmax.f32 %v818, %v819
    %v856 = vmax.f32 %v820, %v821
    %v857 = vmax.f32 %v822, %v823
    %v858 = vmax.f32 %v824, %v825
    %v859 = vmax.f32 %v826, %v827
    %v860 = vmax.f32 %v828, %v829
    %v861 = vmax.f32 %v830, %v831
    %v862 = vmax.f32 %v832, %v833
    %v863 = vmax.f32 %v834, %v835
    %v864 = vmax.f32 %v836, %v837
    %v865 = vmax.f32 %v838, %v839
    %v866 = vpack.c.bf16 %v840, %v840
    %v867 = vpack.c.bf16 %v841, %v841
    %v868 = vpack.c.bf16 %v842, %v842
    %v869 = vpack.c.bf16 %v843, %v843
    %v870 = vpack.c.bf16 %v844, %v844
    %v871 = vpack.c.bf16 %v845, %v845
    %v872 = vpack.c.bf16 %v846, %v846
    %v873 = vpack.c.bf16 %v847, %v847
    %v874 = vpack.c.bf16 %v848, %v848
    %v875 = vpack.c.bf16 %v849, %v849
    %v876 = vpack.c.bf16 %v850, %v850
    %v877 = vpack.c.bf16 %v851, %v851
    %v878 = vpack.c.bf16 %v852, %v852
    %v879 = vpack.c.bf16 %v853, %v853
    %v880 = vpack.c.bf16 %v854, %v854
    %v881 = vpack.c.bf16 %v855, %v855
    %v882 = vpack.c.bf16 %v856, %v856
    %v883 = vpack.c.bf16 %v857, %v857
    %v884 = vpack.c.bf16 %v858, %v858
    %v885 = vpack.c.bf16 %v859, %v859
    %v886 = vpack.c.bf16 %v860, %v860
    %v887 = vpack.c.bf16 %v861, %v861
    %v888 = vpack.c.bf16 %v862, %v862
    %v889 = vpack.c.bf16 %v863, %v863
    %v890 = vpack.c.bf16 %v864, %v864
    %v891 = vpack.c.bf16 %v865, %v865
    %v892 = vld [vmem:[%s3] sm:$0xff]
    %v893 = vld [vmem:[%s3 + $0x8] sm:$0xff]
    %v894 = vld [vmem:[%s3 + $0x10] sm:$0xff]
    %v895 = vld [vmem:[%s3 + $0x18] sm:$0xff]
    %v896 = vld [vmem:[%s3 + $0x20] sm:$0xff]
    %v897 = vld [vmem:[%s3 + $0x28] sm:$0xff]
    %v898 = vld [vmem:[%s3 + $0x30] sm:$0xff]
    %v899 = vld [vmem:[%s3 + $0x38] sm:$0xff]
    %v900 = vld [vmem:[%s3 + $0x40] sm:$0xff]
    %v901 = vld [vmem:[%s3 + $0x48] sm:$0xff]
    %v902 = vld [vmem:[%s3 + $0x50] sm:$0xff]
    %v903 = vld [vmem:[%s3 + $0x58] sm:$0xff]
    %v904 = vld [vmem:[%s3 + $0x60] sm:$0xff]
    %v905 = vld [vmem:[%s3 + $0x68] sm:$0xff]
    %v906 = vld [vmem:[%s3 + $0x70] sm:$0xff]
    %v907 = vld [vmem:[%s3 + $0x78] sm:$0xff]
    %s908 = scalar_lea.vmem %s3, 128
    %v909 = vld [vmem:[%s908] sm:$0xff]
    %v910 = vld [vmem:[%s908 + $0x8] sm:$0xff]
    %v911 = vld [vmem:[%s908 + $0x10] sm:$0xff]
    %v912 = vld [vmem:[%s908 + $0x18] sm:$0xff]
    %v913 = vld [vmem:[%s908 + $0x20] sm:$0xff]
    %v914 = vld [vmem:[%s908 + $0x28] sm:$0xff]
    %v915 = vld [vmem:[%s908 + $0x30] sm:$0xff]
    %v916 = vld [vmem:[%s908 + $0x38] sm:$0xff]
    %v917 = vld [vmem:[%s908 + $0x40] sm:$0xff]
    %v918 = vld [vmem:[%s908 + $0x48] sm:$0xff]
    %v919 = vld [vmem:[%s908 + $0x50] sm:$0xff]
    %v920 = vld [vmem:[%s908 + $0x58] sm:$0xff]
    %v921 = vld [vmem:[%s908 + $0x60] sm:$0xff]
    %v922 = vld [vmem:[%s908 + $0x68] sm:$0xff]
    %v923 = vld [vmem:[%s908 + $0x70] sm:$0xff]
    %v924 = vld [vmem:[%s908 + $0x78] sm:$0xff]
    %v947 = vunpack.c.l.b16 %v868
    %v948 = vunpack.c.l.b16 %v869
    %v949 = vunpack.c.l.b16 %v870
    %v950 = vunpack.c.l.b16 %v871
    %v951 = vunpack.c.l.b16 %v872
    %v952 = vunpack.c.l.b16 %v873
    %v953 = vunpack.c.l.b16 %v874
    %v954 = vunpack.c.l.b16 %v875
    %v955 = vunpack.c.l.b16 %v876
    %v956 = vunpack.c.l.b16 %v877
    %v957 = vunpack.c.l.b16 %v878
    %v958 = vunpack.c.l.b16 %v879
    %v959 = vunpack.c.l.b16 %v880
    %v960 = vunpack.c.l.b16 %v881
    %v961 = vunpack.c.l.b16 %v882
    %v962 = vunpack.c.l.b16 %v883
    %v963 = vunpack.c.l.b16 %v884
    %v964 = vunpack.c.l.b16 %v885
    %v965 = vunpack.c.l.b16 %v886
    %v966 = vunpack.c.l.b16 %v887
    %v967 = vunpack.c.l.b16 %v888
    %v968 = vunpack.c.l.b16 %v889
    %v969 = vpack.c.b16 %v948, %v947
    %v970 = vpack.c.b16 %v950, %v949
    %v971 = vpack.c.b16 %v952, %v951
    %v972 = vpack.c.b16 %v954, %v953
    %v973 = vpack.c.b16 %v956, %v955
    %v974 = vpack.c.b16 %v958, %v957
    %v975 = vpack.c.b16 %v960, %v959
    %v976 = vpack.c.b16 %v962, %v961
    %v977 = vpack.c.b16 %v964, %v963
    %v978 = vpack.c.b16 %v966, %v965
    %v979 = vpack.c.b16 %v968, %v967
    %v1007 = vunpack.c.l.b16 %v909
    %v1008 = vunpack.c.h.b16 %v909
    %v1009 = vunpack.c.l.b16 %v910
    %v1010 = vunpack.c.h.b16 %v910
    %v1011 = vunpack.c.l.b16 %v911
    %v1012 = vunpack.c.h.b16 %v911
    %v1013 = vunpack.c.l.b16 %v912
    %v1014 = vunpack.c.h.b16 %v912
    %v1015 = vunpack.c.l.b16 %v913
    %v1016 = vunpack.c.h.b16 %v913
    %v1017 = vunpack.c.l.b16 %v914
    %v1018 = vunpack.c.h.b16 %v914
    %v1019 = vunpack.c.l.b16 %v915
    %v1020 = vunpack.c.h.b16 %v915
    %v1021 = vunpack.c.l.b16 %v916
    %v1022 = vunpack.c.h.b16 %v916
    %v1023 = vunpack.c.l.b16 %v917
    %v1024 = vunpack.c.h.b16 %v917
    %v1025 = vunpack.c.l.b16 %v918
    %v1026 = vunpack.c.h.b16 %v918
    %v1027 = vunpack.c.l.b16 %v919
    %v1028 = vunpack.c.h.b16 %v919
    %v1029 = vunpack.c.l.b16 %v920
    %v1030 = vunpack.c.h.b16 %v920
    %v1031 = vunpack.c.l.b16 %v921
    %v1032 = vunpack.c.h.b16 %v921
    %v1033 = vunpack.c.l.b16 %v922
    %v1034 = vunpack.c.h.b16 %v922
    %v1035 = vunpack.c.l.b16 %v923
    %v1036 = vunpack.c.h.b16 %v923
    %v1037 = vunpack.c.l.b16 %v924
    %v1038 = vunpack.c.h.b16 %v924
    %v1039 = vpack.c.b16 %v1009, %v1007
    %v1040 = vpack.c.b16 %v1010, %v1008
    %v1041 = vpack.c.b16 %v1013, %v1011
    %v1042 = vpack.c.b16 %v1014, %v1012
    %v1043 = vpack.c.b16 %v1017, %v1015
    %v1044 = vpack.c.b16 %v1018, %v1016
    %v1045 = vpack.c.b16 %v1021, %v1019
    %v1046 = vpack.c.b16 %v1022, %v1020
    %v1047 = vpack.c.b16 %v1025, %v1023
    %v1048 = vpack.c.b16 %v1026, %v1024
    %v1049 = vpack.c.b16 %v1029, %v1027
    %v1050 = vpack.c.b16 %v1030, %v1028
    %v1051 = vpack.c.b16 %v1033, %v1031
    %v1052 = vpack.c.b16 %v1034, %v1032
    %v1053 = vpack.c.b16 %v1037, %v1035
    %v1054 = vpack.c.b16 %v1038, %v1036
    %1071 = vmatpush.bf16.msra.mxu0 %v1053
    %1072 = vmatpush.bf16.msra.mxu0 %v1051
    %1073 = vmatpush.bf16.msra.mxu0 %v1049
    %1074 = vmatpush.bf16.msra.mxu0 %v1047
    %1075 = vmatpush.bf16.msra.mxu0 %v1045
    %1076 = vmatpush.bf16.msra.mxu0 %v1043
    %1077 = vmatpush.bf16.msra.mxu0 %v1041
    %1078 = vmatpush.bf16.msra.mxu0 %v1039
    %1079 = vmatmul.bf16.gmra.mxu0 %v969
    %v1080 = vpop.f32.mrf.mxu0
    %v1081 = vadd.f32 0.0, %v1080
    %v1082 = vpop.f32.mrf.mxu0
    %v1083 = vadd.f32 0.0, %v1082
    %1084 = vmatmul.bf16.gmra.mxu0 %v970
    %v1085 = vpop.f32.mrf.mxu0
    %v1086 = vadd.f32 0.0, %v1085
    %v1087 = vpop.f32.mrf.mxu0
    %v1088 = vadd.f32 0.0, %v1087
    %1089 = vmatmul.bf16.gmra.mxu0 %v971
    %v1090 = vpop.f32.mrf.mxu0
    %v1091 = vadd.f32 0.0, %v1090
    %v1092 = vpop.f32.mrf.mxu0
    %v1093 = vadd.f32 0.0, %v1092
    %1094 = vmatmul.bf16.gmra.mxu0 %v972
    %v1095 = vpop.f32.mrf.mxu0
    %v1096 = vadd.f32 0.0, %v1095
    %v1097 = vpop.f32.mrf.mxu0
    %v1098 = vadd.f32 0.0, %v1097
    %1099 = vmatmul.bf16.gmra.mxu0 %v973
    %v1100 = vpop.f32.mrf.mxu0
    %v1101 = vadd.f32 0.0, %v1100
    %v1102 = vpop.f32.mrf.mxu0
    %v1103 = vadd.f32 0.0, %v1102
    %1104 = vmatmul.bf16.gmra.mxu0 %v974
    %v1105 = vpop.f32.mrf.mxu0
    %v1106 = vadd.f32 0.0, %v1105
    %v1107 = vpop.f32.mrf.mxu0
    %v1108 = vadd.f32 0.0, %v1107
    %1109 = vmatmul.bf16.gmra.mxu0 %v975
    %v1110 = vpop.f32.mrf.mxu0
    %v1111 = vadd.f32 0.0, %v1110
    %v1112 = vpop.f32.mrf.mxu0
    %v1113 = vadd.f32 0.0, %v1112
    %1114 = vmatmul.bf16.gmra.mxu0 %v976
    %v1115 = vpop.f32.mrf.mxu0
    %v1116 = vadd.f32 0.0, %v1115
    %v1117 = vpop.f32.mrf.mxu0
    %v1118 = vadd.f32 0.0, %v1117
    %1119 = vmatmul.bf16.gmra.mxu0 %v977
    %v1120 = vpop.f32.mrf.mxu0
    %v1121 = vadd.f32 0.0, %v1120
    %v1122 = vpop.f32.mrf.mxu0
    %v1123 = vadd.f32 0.0, %v1122
    %1124 = vmatmul.bf16.gmra.mxu0 %v978
    %v1125 = vpop.f32.mrf.mxu0
    %v1126 = vadd.f32 0.0, %v1125
    %v1127 = vpop.f32.mrf.mxu0
    %v1128 = vadd.f32 0.0, %v1127
    %1129 = vmatmul.bf16.gmra.mxu0 %v979
    %v1130 = vpop.f32.mrf.mxu0
    %v1131 = vpop.f32.mrf.mxu0
    %1132 = vdwg.mxu0
    %1133 = vmatpush.bf16.msra.mxu0 %v1054
    %1134 = vmatpush.bf16.msra.mxu0 %v1052
    %1135 = vmatpush.bf16.msra.mxu0 %v1050
    %1136 = vmatpush.bf16.msra.mxu0 %v1048
    %1137 = vmatpush.bf16.msra.mxu0 %v1046
    %1138 = vmatpush.bf16.msra.mxu0 %v1044
    %1139 = vmatpush.bf16.msra.mxu0 %v1042
    %1140 = vmatpush.bf16.msra.mxu0 %v1040
    %1141 = vmatmul.bf16.gmra.mxu0 %v969
    %v1142 = vpop.f32.mrf.mxu0
    %v1143 = vadd.f32 0.0, %v1142
    %v1144 = vpop.f32.mrf.mxu0
    %v1145 = vadd.f32 0.0, %v1144
    %1146 = vmatmul.bf16.gmra.mxu0 %v970
    %v1147 = vpop.f32.mrf.mxu0
    %v1148 = vadd.f32 0.0, %v1147
    %v1149 = vpop.f32.mrf.mxu0
    %v1150 = vadd.f32 0.0, %v1149
    %1151 = vmatmul.bf16.gmra.mxu0 %v971
    %v1152 = vpop.f32.mrf.mxu0
    %v1153 = vadd.f32 0.0, %v1152
    %v1154 = vpop.f32.mrf.mxu0
    %v1155 = vadd.f32 0.0, %v1154
    %1156 = vmatmul.bf16.gmra.mxu0 %v972
    %v1157 = vpop.f32.mrf.mxu0
    %v1158 = vadd.f32 0.0, %v1157
    %v1159 = vpop.f32.mrf.mxu0
    %v1160 = vadd.f32 0.0, %v1159
    %1161 = vmatmul.bf16.gmra.mxu0 %v973
    %v1162 = vpop.f32.mrf.mxu0
    %v1163 = vadd.f32 0.0, %v1162
    %v1164 = vpop.f32.mrf.mxu0
    %v1165 = vadd.f32 0.0, %v1164
    %1166 = vmatmul.bf16.gmra.mxu0 %v974
    %v1167 = vpop.f32.mrf.mxu0
    %v1168 = vadd.f32 0.0, %v1167
    %v1169 = vpop.f32.mrf.mxu0
    %v1170 = vadd.f32 0.0, %v1169
    %1171 = vmatmul.bf16.gmra.mxu0 %v975
    %v1172 = vpop.f32.mrf.mxu0
    %v1173 = vadd.f32 0.0, %v1172
    %v1174 = vpop.f32.mrf.mxu0
    %v1175 = vadd.f32 0.0, %v1174
    %1176 = vmatmul.bf16.gmra.mxu0 %v976
    %v1177 = vpop.f32.mrf.mxu0
    %v1178 = vadd.f32 0.0, %v1177
    %v1179 = vpop.f32.mrf.mxu0
    %v1180 = vadd.f32 0.0, %v1179
    %1181 = vmatmul.bf16.gmra.mxu0 %v977
    %v1182 = vpop.f32.mrf.mxu0
    %v1183 = vadd.f32 0.0, %v1182
    %v1184 = vpop.f32.mrf.mxu0
    %v1185 = vadd.f32 0.0, %v1184
    %1186 = vmatmul.bf16.gmra.mxu0 %v978
    %v1187 = vpop.f32.mrf.mxu0
    %v1188 = vadd.f32 0.0, %v1187
    %v1189 = vpop.f32.mrf.mxu0
    %v1190 = vadd.f32 0.0, %v1189
    %1191 = vmatmul.bf16.gmra.mxu0 %v979
    %v1192 = vpop.f32.mrf.mxu0
    %v1193 = vpop.f32.mrf.mxu0
    %1194 = vdwg.mxu0
    %v1197 = vunpack.c.l.b16 %v866
    %v1198 = vunpack.c.l.b16 %v867
    %v1199 = vpack.c.b16 %v1198, %v1197
    %v1217 = vunpack.c.l.b16 %v892
    %v1218 = vunpack.c.h.b16 %v892
    %v1219 = vunpack.c.l.b16 %v893
    %v1220 = vunpack.c.h.b16 %v893
    %v1221 = vunpack.c.l.b16 %v894
    %v1222 = vunpack.c.h.b16 %v894
    %v1223 = vunpack.c.l.b16 %v895
    %v1224 = vunpack.c.h.b16 %v895
    %v1225 = vunpack.c.l.b16 %v896
    %v1226 = vunpack.c.h.b16 %v896
    %v1227 = vunpack.c.l.b16 %v897
    %v1228 = vunpack.c.h.b16 %v897
    %v1229 = vunpack.c.l.b16 %v898
    %v1230 = vunpack.c.h.b16 %v898
    %v1231 = vunpack.c.l.b16 %v899
    %v1232 = vunpack.c.h.b16 %v899
    %v1233 = vunpack.c.l.b16 %v900
    %v1234 = vunpack.c.h.b16 %v900
    %v1235 = vunpack.c.l.b16 %v901
    %v1236 = vunpack.c.h.b16 %v901
    %v1237 = vunpack.c.l.b16 %v902
    %v1238 = vunpack.c.h.b16 %v902
    %v1239 = vunpack.c.l.b16 %v903
    %v1240 = vunpack.c.h.b16 %v903
    %v1241 = vunpack.c.l.b16 %v904
    %v1242 = vunpack.c.h.b16 %v904
    %v1243 = vunpack.c.l.b16 %v905
    %v1244 = vunpack.c.h.b16 %v905
    %v1245 = vunpack.c.l.b16 %v906
    %v1246 = vunpack.c.h.b16 %v906
    %v1247 = vunpack.c.l.b16 %v907
    %v1248 = vunpack.c.h.b16 %v907
    %v1249 = vpack.c.b16 %v1219, %v1217
    %v1250 = vpack.c.b16 %v1220, %v1218
    %v1251 = vpack.c.b16 %v1223, %v1221
    %v1252 = vpack.c.b16 %v1224, %v1222
    %v1253 = vpack.c.b16 %v1227, %v1225
    %v1254 = vpack.c.b16 %v1228, %v1226
    %v1255 = vpack.c.b16 %v1231, %v1229
    %v1256 = vpack.c.b16 %v1232, %v1230
    %v1257 = vpack.c.b16 %v1235, %v1233
    %v1258 = vpack.c.b16 %v1236, %v1234
    %v1259 = vpack.c.b16 %v1239, %v1237
    %v1260 = vpack.c.b16 %v1240, %v1238
    %v1261 = vpack.c.b16 %v1243, %v1241
    %v1262 = vpack.c.b16 %v1244, %v1242
    %v1263 = vpack.c.b16 %v1247, %v1245
    %v1264 = vpack.c.b16 %v1248, %v1246
    %1281 = vmatpush.bf16.msra.mxu0 %v1263
    %1282 = vmatpush.bf16.msra.mxu0 %v1261
    %1283 = vmatpush.bf16.msra.mxu0 %v1259
    %1284 = vmatpush.bf16.msra.mxu0 %v1257
    %1285 = vmatpush.bf16.msra.mxu0 %v1255
    %1286 = vmatpush.bf16.msra.mxu0 %v1253
    %1287 = vmatpush.bf16.msra.mxu0 %v1251
    %1288 = vmatpush.bf16.msra.mxu0 %v1249
    %1289 = vmatmul.bf16.gmra.mxu0 %v1199
    %v1290 = vpop.f32.mrf.mxu0
    %v1291 = vadd.f32 %v1081, %v1290
    %v1292 = vpop.f32.mrf.mxu0
    %v1293 = vadd.f32 %v1083, %v1292
    %1294 = vmatmul.bf16.gmra.mxu0 %v969
    %v1295 = vpop.f32.mrf.mxu0
    %v1296 = vadd.f32 %v1086, %v1295
    %v1297 = vpop.f32.mrf.mxu0
    %v1298 = vadd.f32 %v1088, %v1297
    %1299 = vmatmul.bf16.gmra.mxu0 %v970
    %v1300 = vpop.f32.mrf.mxu0
    %v1301 = vadd.f32 %v1091, %v1300
    %v1302 = vpop.f32.mrf.mxu0
    %v1303 = vadd.f32 %v1093, %v1302
    %1304 = vmatmul.bf16.gmra.mxu0 %v971
    %v1305 = vpop.f32.mrf.mxu0
    %v1306 = vadd.f32 %v1096, %v1305
    %v1307 = vpop.f32.mrf.mxu0
    %v1308 = vadd.f32 %v1098, %v1307
    %1309 = vmatmul.bf16.gmra.mxu0 %v972
    %v1310 = vpop.f32.mrf.mxu0
    %v1311 = vadd.f32 %v1101, %v1310
    %v1312 = vpop.f32.mrf.mxu0
    %v1313 = vadd.f32 %v1103, %v1312
    %1314 = vmatmul.bf16.gmra.mxu0 %v973
    %v1315 = vpop.f32.mrf.mxu0
    %v1316 = vadd.f32 %v1106, %v1315
    %v1317 = vpop.f32.mrf.mxu0
    %v1318 = vadd.f32 %v1108, %v1317
    %1319 = vmatmul.bf16.gmra.mxu0 %v974
    %v1320 = vpop.f32.mrf.mxu0
    %v1321 = vadd.f32 %v1111, %v1320
    %v1322 = vpop.f32.mrf.mxu0
    %v1323 = vadd.f32 %v1113, %v1322
    %1324 = vmatmul.bf16.gmra.mxu0 %v975
    %v1325 = vpop.f32.mrf.mxu0
    %v1326 = vadd.f32 %v1116, %v1325
    %v1327 = vpop.f32.mrf.mxu0
    %v1328 = vadd.f32 %v1118, %v1327
    %1329 = vmatmul.bf16.gmra.mxu0 %v976
    %v1330 = vpop.f32.mrf.mxu0
    %v1331 = vadd.f32 %v1121, %v1330
    %v1332 = vpop.f32.mrf.mxu0
    %v1333 = vadd.f32 %v1123, %v1332
    %1334 = vmatmul.bf16.gmra.mxu0 %v977
    %v1335 = vpop.f32.mrf.mxu0
    %v1336 = vadd.f32 %v1126, %v1335
    %v1337 = vpop.f32.mrf.mxu0
    %v1338 = vadd.f32 %v1128, %v1337
    %1339 = vmatmul.bf16.gmra.mxu0 %v978
    %v1340 = vpop.f32.mrf.mxu0
    %v1341 = vpop.f32.mrf.mxu0
    %1342 = vdwg.mxu0
    %1343 = vmatpush.bf16.msra.mxu0 %v1264
    %1344 = vmatpush.bf16.msra.mxu0 %v1262
    %1345 = vmatpush.bf16.msra.mxu0 %v1260
    %1346 = vmatpush.bf16.msra.mxu0 %v1258
    %1347 = vmatpush.bf16.msra.mxu0 %v1256
    %1348 = vmatpush.bf16.msra.mxu0 %v1254
    %1349 = vmatpush.bf16.msra.mxu0 %v1252
    %1350 = vmatpush.bf16.msra.mxu0 %v1250
    %1351 = vmatmul.bf16.gmra.mxu0 %v1199
    %v1352 = vpop.f32.mrf.mxu0
    %v1353 = vadd.f32 %v1143, %v1352
    %v1354 = vpop.f32.mrf.mxu0
    %v1355 = vadd.f32 %v1145, %v1354
    %1356 = vmatmul.bf16.gmra.mxu0 %v969
    %v1357 = vpop.f32.mrf.mxu0
    %v1358 = vadd.f32 %v1148, %v1357
    %v1359 = vpop.f32.mrf.mxu0
    %v1360 = vadd.f32 %v1150, %v1359
    %1361 = vmatmul.bf16.gmra.mxu0 %v970
    %v1362 = vpop.f32.mrf.mxu0
    %v1363 = vadd.f32 %v1153, %v1362
    %v1364 = vpop.f32.mrf.mxu0
    %v1365 = vadd.f32 %v1155, %v1364
    %1366 = vmatmul.bf16.gmra.mxu0 %v971
    %v1367 = vpop.f32.mrf.mxu0
    %v1368 = vadd.f32 %v1158, %v1367
    %v1369 = vpop.f32.mrf.mxu0
    %v1370 = vadd.f32 %v1160, %v1369
    %1371 = vmatmul.bf16.gmra.mxu0 %v972
    %v1372 = vpop.f32.mrf.mxu0
    %v1373 = vadd.f32 %v1163, %v1372
    %v1374 = vpop.f32.mrf.mxu0
    %v1375 = vadd.f32 %v1165, %v1374
    %1376 = vmatmul.bf16.gmra.mxu0 %v973
    %v1377 = vpop.f32.mrf.mxu0
    %v1378 = vadd.f32 %v1168, %v1377
    %v1379 = vpop.f32.mrf.mxu0
    %v1380 = vadd.f32 %v1170, %v1379
    %1381 = vmatmul.bf16.gmra.mxu0 %v974
    %v1382 = vpop.f32.mrf.mxu0
    %v1383 = vadd.f32 %v1173, %v1382
    %v1384 = vpop.f32.mrf.mxu0
    %v1385 = vadd.f32 %v1175, %v1384
    %1386 = vmatmul.bf16.gmra.mxu0 %v975
    %v1387 = vpop.f32.mrf.mxu0
    %v1388 = vadd.f32 %v1178, %v1387
    %v1389 = vpop.f32.mrf.mxu0
    %v1390 = vadd.f32 %v1180, %v1389
    %1391 = vmatmul.bf16.gmra.mxu0 %v976
    %v1392 = vpop.f32.mrf.mxu0
    %v1393 = vadd.f32 %v1183, %v1392
    %v1394 = vpop.f32.mrf.mxu0
    %v1395 = vadd.f32 %v1185, %v1394
    %1396 = vmatmul.bf16.gmra.mxu0 %v977
    %v1397 = vpop.f32.mrf.mxu0
    %v1398 = vadd.f32 %v1188, %v1397
    %v1399 = vpop.f32.mrf.mxu0
    %v1400 = vadd.f32 %v1190, %v1399
    %1401 = vmatmul.bf16.gmra.mxu0 %v978
    %v1402 = vpop.f32.mrf.mxu0
    %v1403 = vpop.f32.mrf.mxu0
    %1404 = vdwg.mxu0
    %s1405 = scalar_lea.vmem %s3, 256
    %v1406 = vld [vmem:[%s1405] sm:$0xff]
    %v1407 = vld [vmem:[%s1405 + $0x8] sm:$0xff]
    %v1408 = vld [vmem:[%s1405 + $0x10] sm:$0xff]
    %v1409 = vld [vmem:[%s1405 + $0x18] sm:$0xff]
    %v1410 = vld [vmem:[%s1405 + $0x20] sm:$0xff]
    %v1411 = vld [vmem:[%s1405 + $0x28] sm:$0xff]
    %v1412 = vld [vmem:[%s1405 + $0x30] sm:$0xff]
    %v1413 = vld [vmem:[%s1405 + $0x38] sm:$0xff]
    %v1414 = vld [vmem:[%s1405 + $0x40] sm:$0xff]
    %v1415 = vld [vmem:[%s1405 + $0x48] sm:$0xff]
    %v1416 = vld [vmem:[%s1405 + $0x50] sm:$0xff]
    %v1417 = vld [vmem:[%s1405 + $0x58] sm:$0xff]
    %v1418 = vld [vmem:[%s1405 + $0x60] sm:$0xff]
    %v1419 = vld [vmem:[%s1405 + $0x68] sm:$0xff]
    %v1420 = vld [vmem:[%s1405 + $0x70] sm:$0xff]
    %v1421 = vld [vmem:[%s1405 + $0x78] sm:$0xff]
    %v1424 = vunpack.c.l.b16 %v890
    %v1425 = vunpack.c.l.b16 %v891
    %v1426 = vpack.c.b16 %v1425, %v1424
    %v1444 = vunpack.c.l.b16 %v1406
    %v1445 = vunpack.c.h.b16 %v1406
    %v1446 = vunpack.c.l.b16 %v1407
    %v1447 = vunpack.c.h.b16 %v1407
    %v1448 = vunpack.c.l.b16 %v1408
    %v1449 = vunpack.c.h.b16 %v1408
    %v1450 = vunpack.c.l.b16 %v1409
    %v1451 = vunpack.c.h.b16 %v1409
    %v1452 = vunpack.c.l.b16 %v1410
    %v1453 = vunpack.c.h.b16 %v1410
    %v1454 = vunpack.c.l.b16 %v1411
    %v1455 = vunpack.c.h.b16 %v1411
    %v1456 = vunpack.c.l.b16 %v1412
    %v1457 = vunpack.c.h.b16 %v1412
    %v1458 = vunpack.c.l.b16 %v1413
    %v1459 = vunpack.c.h.b16 %v1413
    %v1460 = vunpack.c.l.b16 %v1414
    %v1461 = vunpack.c.h.b16 %v1414
    %v1462 = vunpack.c.l.b16 %v1415
    %v1463 = vunpack.c.h.b16 %v1415
    %v1464 = vunpack.c.l.b16 %v1416
    %v1465 = vunpack.c.h.b16 %v1416
    %v1466 = vunpack.c.l.b16 %v1417
    %v1467 = vunpack.c.h.b16 %v1417
    %v1468 = vunpack.c.l.b16 %v1418
    %v1469 = vunpack.c.h.b16 %v1418
    %v1470 = vunpack.c.l.b16 %v1419
    %v1471 = vunpack.c.h.b16 %v1419
    %v1472 = vunpack.c.l.b16 %v1420
    %v1473 = vunpack.c.h.b16 %v1420
    %v1474 = vunpack.c.l.b16 %v1421
    %v1475 = vunpack.c.h.b16 %v1421
    %v1476 = vpack.c.b16 %v1446, %v1444
    %v1477 = vpack.c.b16 %v1447, %v1445
    %v1478 = vpack.c.b16 %v1450, %v1448
    %v1479 = vpack.c.b16 %v1451, %v1449
    %v1480 = vpack.c.b16 %v1454, %v1452
    %v1481 = vpack.c.b16 %v1455, %v1453
    %v1482 = vpack.c.b16 %v1458, %v1456
    %v1483 = vpack.c.b16 %v1459, %v1457
    %v1484 = vpack.c.b16 %v1462, %v1460
    %v1485 = vpack.c.b16 %v1463, %v1461
    %v1486 = vpack.c.b16 %v1466, %v1464
    %v1487 = vpack.c.b16 %v1467, %v1465
    %v1488 = vpack.c.b16 %v1470, %v1468
    %v1489 = vpack.c.b16 %v1471, %v1469
    %v1490 = vpack.c.b16 %v1474, %v1472
    %v1491 = vpack.c.b16 %v1475, %v1473
    %1508 = vmatpush.bf16.msra.mxu0 %v1490
    %1509 = vmatpush.bf16.msra.mxu0 %v1488
    %1510 = vmatpush.bf16.msra.mxu0 %v1486
    %1511 = vmatpush.bf16.msra.mxu0 %v1484
    %1512 = vmatpush.bf16.msra.mxu0 %v1482
    %1513 = vmatpush.bf16.msra.mxu0 %v1480
    %1514 = vmatpush.bf16.msra.mxu0 %v1478
    %1515 = vmatpush.bf16.msra.mxu0 %v1476
    %1516 = vmatmul.bf16.gmra.mxu0 %v970
    %v1517 = vpop.f32.mrf.mxu0
    %v1518 = vadd.f32 0.0, %v1517
    %v1519 = vpop.f32.mrf.mxu0
    %v1520 = vadd.f32 0.0, %v1519
    %1521 = vmatmul.bf16.gmra.mxu0 %v971
    %v1522 = vpop.f32.mrf.mxu0
    %v1523 = vadd.f32 0.0, %v1522
    %v1524 = vpop.f32.mrf.mxu0
    %v1525 = vadd.f32 0.0, %v1524
    %1526 = vmatmul.bf16.gmra.mxu0 %v972
    %v1527 = vpop.f32.mrf.mxu0
    %v1528 = vadd.f32 0.0, %v1527
    %v1529 = vpop.f32.mrf.mxu0
    %v1530 = vadd.f32 0.0, %v1529
    %1531 = vmatmul.bf16.gmra.mxu0 %v973
    %v1532 = vpop.f32.mrf.mxu0
    %v1533 = vadd.f32 0.0, %v1532
    %v1534 = vpop.f32.mrf.mxu0
    %v1535 = vadd.f32 0.0, %v1534
    %1536 = vmatmul.bf16.gmra.mxu0 %v974
    %v1537 = vpop.f32.mrf.mxu0
    %v1538 = vadd.f32 0.0, %v1537
    %v1539 = vpop.f32.mrf.mxu0
    %v1540 = vadd.f32 0.0, %v1539
    %1541 = vmatmul.bf16.gmra.mxu0 %v975
    %v1542 = vpop.f32.mrf.mxu0
    %v1543 = vadd.f32 0.0, %v1542
    %v1544 = vpop.f32.mrf.mxu0
    %v1545 = vadd.f32 0.0, %v1544
    %1546 = vmatmul.bf16.gmra.mxu0 %v976
    %v1547 = vpop.f32.mrf.mxu0
    %v1548 = vadd.f32 0.0, %v1547
    %v1549 = vpop.f32.mrf.mxu0
    %v1550 = vadd.f32 0.0, %v1549
    %1551 = vmatmul.bf16.gmra.mxu0 %v977
    %v1552 = vpop.f32.mrf.mxu0
    %v1553 = vadd.f32 0.0, %v1552
    %v1554 = vpop.f32.mrf.mxu0
    %v1555 = vadd.f32 0.0, %v1554
    %1556 = vmatmul.bf16.gmra.mxu0 %v978
    %v1557 = vpop.f32.mrf.mxu0
    %v1558 = vadd.f32 0.0, %v1557
    %v1559 = vpop.f32.mrf.mxu0
    %v1560 = vadd.f32 0.0, %v1559
    %1561 = vmatmul.bf16.gmra.mxu0 %v979
    %v1562 = vpop.f32.mrf.mxu0
    %v1563 = vadd.f32 0.0, %v1562
    %v1564 = vpop.f32.mrf.mxu0
    %v1565 = vadd.f32 0.0, %v1564
    %1566 = vmatmul.bf16.gmra.mxu0 %v1426
    %v1567 = vpop.f32.mrf.mxu0
    %v1568 = vpop.f32.mrf.mxu0
    %1569 = vdwg.mxu0
    %1570 = vmatpush.bf16.msra.mxu0 %v1491
    %1571 = vmatpush.bf16.msra.mxu0 %v1489
    %1572 = vmatpush.bf16.msra.mxu0 %v1487
    %1573 = vmatpush.bf16.msra.mxu0 %v1485
    %1574 = vmatpush.bf16.msra.mxu0 %v1483
    %1575 = vmatpush.bf16.msra.mxu0 %v1481
    %1576 = vmatpush.bf16.msra.mxu0 %v1479
    %1577 = vmatpush.bf16.msra.mxu0 %v1477
    %1578 = vmatmul.bf16.gmra.mxu0 %v970
    %v1579 = vpop.f32.mrf.mxu0
    %v1580 = vadd.f32 0.0, %v1579
    %v1581 = vpop.f32.mrf.mxu0
    %v1582 = vadd.f32 0.0, %v1581
    %1583 = vmatmul.bf16.gmra.mxu0 %v971
    %v1584 = vpop.f32.mrf.mxu0
    %v1585 = vadd.f32 0.0, %v1584
    %v1586 = vpop.f32.mrf.mxu0
    %v1587 = vadd.f32 0.0, %v1586
    %1588 = vmatmul.bf16.gmra.mxu0 %v972
    %v1589 = vpop.f32.mrf.mxu0
    %v1590 = vadd.f32 0.0, %v1589
    %v1591 = vpop.f32.mrf.mxu0
    %v1592 = vadd.f32 0.0, %v1591
    %1593 = vmatmul.bf16.gmra.mxu0 %v973
    %v1594 = vpop.f32.mrf.mxu0
    %v1595 = vadd.f32 0.0, %v1594
    %v1596 = vpop.f32.mrf.mxu0
    %v1597 = vadd.f32 0.0, %v1596
    %1598 = vmatmul.bf16.gmra.mxu0 %v974
    %v1599 = vpop.f32.mrf.mxu0
    %v1600 = vadd.f32 0.0, %v1599
    %v1601 = vpop.f32.mrf.mxu0
    %v1602 = vadd.f32 0.0, %v1601
    %1603 = vmatmul.bf16.gmra.mxu0 %v975
    %v1604 = vpop.f32.mrf.mxu0
    %v1605 = vadd.f32 0.0, %v1604
    %v1606 = vpop.f32.mrf.mxu0
    %v1607 = vadd.f32 0.0, %v1606
    %1608 = vmatmul.bf16.gmra.mxu0 %v976
    %v1609 = vpop.f32.mrf.mxu0
    %v1610 = vadd.f32 0.0, %v1609
    %v1611 = vpop.f32.mrf.mxu0
    %v1612 = vadd.f32 0.0, %v1611
    %1613 = vmatmul.bf16.gmra.mxu0 %v977
    %v1614 = vpop.f32.mrf.mxu0
    %v1615 = vadd.f32 0.0, %v1614
    %v1616 = vpop.f32.mrf.mxu0
    %v1617 = vadd.f32 0.0, %v1616
    %1618 = vmatmul.bf16.gmra.mxu0 %v978
    %v1619 = vpop.f32.mrf.mxu0
    %v1620 = vadd.f32 0.0, %v1619
    %v1621 = vpop.f32.mrf.mxu0
    %v1622 = vadd.f32 0.0, %v1621
    %1623 = vmatmul.bf16.gmra.mxu0 %v979
    %v1624 = vpop.f32.mrf.mxu0
    %v1625 = vadd.f32 0.0, %v1624
    %v1626 = vpop.f32.mrf.mxu0
    %v1627 = vadd.f32 0.0, %v1626
    %1628 = vmatmul.bf16.gmra.mxu0 %v1426
    %v1629 = vpop.f32.mrf.mxu0
    %v1630 = vpop.f32.mrf.mxu0
    %1631 = vdwg.mxu0
    %v1632 = vadd.f32 %v1291, %v1518
    %v1633 = vadd.f32 %v1353, %v1580
    %v1634 = vadd.f32 %v1293, %v1520
    %v1635 = vadd.f32 %v1355, %v1582
    %v1636 = vadd.f32 %v1296, %v1523
    %v1637 = vadd.f32 %v1358, %v1585
    %v1638 = vadd.f32 %v1298, %v1525
    %v1639 = vadd.f32 %v1360, %v1587
    %v1640 = vadd.f32 %v1301, %v1528
    %v1641 = vadd.f32 %v1363, %v1590
    %v1642 = vadd.f32 %v1303, %v1530
    %v1643 = vadd.f32 %v1365, %v1592
    %v1644 = vadd.f32 %v1306, %v1533
    %v1645 = vadd.f32 %v1368, %v1595
    %v1646 = vadd.f32 %v1308, %v1535
    %v1647 = vadd.f32 %v1370, %v1597
    %v1648 = vadd.f32 %v1311, %v1538
    %v1649 = vadd.f32 %v1373, %v1600
    %v1650 = vadd.f32 %v1313, %v1540
    %v1651 = vadd.f32 %v1375, %v1602
    %v1652 = vadd.f32 %v1316, %v1543
    %v1653 = vadd.f32 %v1378, %v1605
    %v1654 = vadd.f32 %v1318, %v1545
    %v1655 = vadd.f32 %v1380, %v1607
    %v1656 = vadd.f32 %v1321, %v1548
    %v1657 = vadd.f32 %v1383, %v1610
    %v1658 = vadd.f32 %v1323, %v1550
    %v1659 = vadd.f32 %v1385, %v1612
    %v1660 = vadd.f32 %v1326, %v1553
    %v1661 = vadd.f32 %v1388, %v1615
    %v1662 = vadd.f32 %v1328, %v1555
    %v1663 = vadd.f32 %v1390, %v1617
    %v1664 = vadd.f32 %v1331, %v1558
    %v1665 = vadd.f32 %v1393, %v1620
    %v1666 = vadd.f32 %v1333, %v1560
    %v1667 = vadd.f32 %v1395, %v1622
    %v1668 = vadd.f32 %v1336, %v1563
    %v1669 = vadd.f32 %v1398, %v1625
    %v1670 = vadd.f32 %v1338, %v1565
    %v1671 = vadd.f32 %v1400, %v1627
    %v1672 = vld [vmem:[%s4] sm:$0x3]
    %v1674 = vperm.slane %v1672, 0
    %v1675 = vperm.slane %v1672, 1
    %v1678 = vadd.f32 %v1632, %v1674
    %v1679 = vadd.f32 %v1633, %v1675
    %v1680 = vadd.f32 %v1634, %v1674
    %v1681 = vadd.f32 %v1635, %v1675
    %v1682 = vadd.f32 %v1636, %v1674
    %v1683 = vadd.f32 %v1637, %v1675
    %v1684 = vadd.f32 %v1638, %v1674
    %v1685 = vadd.f32 %v1639, %v1675
    %v1686 = vadd.f32 %v1640, %v1674
    %v1687 = vadd.f32 %v1641, %v1675
    %v1688 = vadd.f32 %v1642, %v1674
    %v1689 = vadd.f32 %v1643, %v1675
    %v1690 = vadd.f32 %v1644, %v1674
    %v1691 = vadd.f32 %v1645, %v1675
    %v1692 = vadd.f32 %v1646, %v1674
    %v1693 = vadd.f32 %v1647, %v1675
    %v1694 = vadd.f32 %v1648, %v1674
    %v1695 = vadd.f32 %v1649, %v1675
    %v1696 = vadd.f32 %v1650, %v1674
    %v1697 = vadd.f32 %v1651, %v1675
    %v1698 = vadd.f32 %v1652, %v1674
    %v1699 = vadd.f32 %v1653, %v1675
    %v1700 = vadd.f32 %v1654, %v1674
    %v1701 = vadd.f32 %v1655, %v1675
    %v1702 = vadd.f32 %v1656, %v1674
    %v1703 = vadd.f32 %v1657, %v1675
    %v1704 = vadd.f32 %v1658, %v1674
    %v1705 = vadd.f32 %v1659, %v1675
    %v1706 = vadd.f32 %v1660, %v1674
    %v1707 = vadd.f32 %v1661, %v1675
    %v1708 = vadd.f32 %v1662, %v1674
    %v1709 = vadd.f32 %v1663, %v1675
    %v1710 = vadd.f32 %v1664, %v1674
    %v1711 = vadd.f32 %v1665, %v1675
    %v1712 = vadd.f32 %v1666, %v1674
    %v1713 = vadd.f32 %v1667, %v1675
    %v1714 = vadd.f32 %v1668, %v1674
    %v1715 = vadd.f32 %v1669, %v1675
    %v1716 = vadd.f32 %v1670, %v1674
    %v1717 = vadd.f32 %v1671, %v1675
    %v1718 = vmax.f32 %v1678, 0.0
    %v1719 = vmax.f32 %v1679, 0.0
    %v1720 = vmax.f32 %v1680, 0.0
    %v1721 = vmax.f32 %v1681, 0.0
    %v1722 = vmax.f32 %v1682, 0.0
    %v1723 = vmax.f32 %v1683, 0.0
    %v1724 = vmax.f32 %v1684, 0.0
    %v1725 = vmax.f32 %v1685, 0.0
    %v1726 = vmax.f32 %v1686, 0.0
    %v1727 = vmax.f32 %v1687, 0.0
    %v1728 = vmax.f32 %v1688, 0.0
    %v1729 = vmax.f32 %v1689, 0.0
    %v1730 = vmax.f32 %v1690, 0.0
    %v1731 = vmax.f32 %v1691, 0.0
    %v1732 = vmax.f32 %v1692, 0.0
    %v1733 = vmax.f32 %v1693, 0.0
    %v1734 = vmax.f32 %v1694, 0.0
    %v1735 = vmax.f32 %v1695, 0.0
    %v1736 = vmax.f32 %v1696, 0.0
    %v1737 = vmax.f32 %v1697, 0.0
    %v1738 = vmax.f32 %v1698, 0.0
    %v1739 = vmax.f32 %v1699, 0.0
    %v1740 = vmax.f32 %v1700, 0.0
    %v1741 = vmax.f32 %v1701, 0.0
    %v1742 = vmax.f32 %v1702, 0.0
    %v1743 = vmax.f32 %v1703, 0.0
    %v1744 = vmax.f32 %v1704, 0.0
    %v1745 = vmax.f32 %v1705, 0.0
    %v1746 = vmax.f32 %v1706, 0.0
    %v1747 = vmax.f32 %v1707, 0.0
    %v1748 = vmax.f32 %v1708, 0.0
    %v1749 = vmax.f32 %v1709, 0.0
    %v1750 = vmax.f32 %v1710, 0.0
    %v1751 = vmax.f32 %v1711, 0.0
    %v1752 = vmax.f32 %v1712, 0.0
    %v1753 = vmax.f32 %v1713, 0.0
    %v1754 = vmax.f32 %v1714, 0.0
    %v1755 = vmax.f32 %v1715, 0.0
    %v1756 = vmax.f32 %v1716, 0.0
    %v1757 = vmax.f32 %v1717, 0.0
    %v1758 = vmax.f32 %v1718, %v1722
    %v1759 = vmax.f32 %v1719, %v1723
    %v1760 = vmax.f32 %v1720, %v1724
    %v1761 = vmax.f32 %v1721, %v1725
    %v1762 = vmax.f32 %v1726, %v1730
    %v1763 = vmax.f32 %v1727, %v1731
    %v1764 = vmax.f32 %v1728, %v1732
    %v1765 = vmax.f32 %v1729, %v1733
    %v1766 = vmax.f32 %v1734, %v1738
    %v1767 = vmax.f32 %v1735, %v1739
    %v1768 = vmax.f32 %v1736, %v1740
    %v1769 = vmax.f32 %v1737, %v1741
    %v1770 = vmax.f32 %v1742, %v1746
    %v1771 = vmax.f32 %v1743, %v1747
    %v1772 = vmax.f32 %v1744, %v1748
    %v1773 = vmax.f32 %v1745, %v1749
    %v1774 = vmax.f32 %v1750, %v1754
    %v1775 = vmax.f32 %v1751, %v1755
    %v1776 = vmax.f32 %v1752, %v1756
    %v1777 = vmax.f32 %v1753, %v1757
    %v1778 = vmax.f32 %v1758, %v1759
    %v1779 = vmax.f32 %v1760, %v1761
    %v1780 = vmax.f32 %v1762, %v1763
    %v1781 = vmax.f32 %v1764, %v1765
    %v1782 = vmax.f32 %v1766, %v1767
    %v1783 = vmax.f32 %v1768, %v1769
    %v1784 = vmax.f32 %v1770, %v1771
    %v1785 = vmax.f32 %v1772, %v1773
    %v1786 = vmax.f32 %v1774, %v1775
    %v1787 = vmax.f32 %v1776, %v1777
    %v1788 = vpack.c.bf16 %v1778, %v1778
    %v1789 = vpack.c.bf16 %v1779, %v1779
    %v1790 = vpack.c.bf16 %v1780, %v1780
    %v1791 = vpack.c.bf16 %v1781, %v1781
    %v1792 = vpack.c.bf16 %v1782, %v1782
    %v1793 = vpack.c.bf16 %v1783, %v1783
    %v1794 = vpack.c.bf16 %v1784, %v1784
    %v1795 = vpack.c.bf16 %v1785, %v1785
    %v1796 = vpack.c.bf16 %v1786, %v1786
    %v1797 = vpack.c.bf16 %v1787, %v1787
    %v1798 = vld [vmem:[%s5] sm:$0xf]
    %v1799 = vld [vmem:[%s5 + $0x4] sm:$0xf]
    %v1800 = vld [vmem:[%s5 + $0x8] sm:$0xf]
    %v1801 = vld [vmem:[%s5 + $0xc] sm:$0xf]
    %v1802 = vld [vmem:[%s5 + $0x10] sm:$0xf]
    %v1803 = vld [vmem:[%s5 + $0x14] sm:$0xf]
    %v1804 = vld [vmem:[%s5 + $0x18] sm:$0xf]
    %v1805 = vld [vmem:[%s5 + $0x1c] sm:$0xf]
    %v1806 = vld [vmem:[%s5 + $0x20] sm:$0xf]
    %v1807 = vld [vmem:[%s5 + $0x24] sm:$0xf]
    %v1808 = vld [vmem:[%s5 + $0x28] sm:$0xf]
    %v1809 = vld [vmem:[%s5 + $0x2c] sm:$0xf]
    %v1810 = vld [vmem:[%s5 + $0x30] sm:$0xf]
    %v1811 = vld [vmem:[%s5 + $0x34] sm:$0xf]
    %v1812 = vld [vmem:[%s5 + $0x38] sm:$0xf]
    %v1813 = vld [vmem:[%s5 + $0x3c] sm:$0xf]
    %s1814 = scalar_lea.vmem %s5, 64
    %v1815 = vld [vmem:[%s1814] sm:$0xf]
    %v1816 = vld [vmem:[%s1814 + $0x4] sm:$0xf]
    %v1817 = vld [vmem:[%s1814 + $0x8] sm:$0xf]
    %v1818 = vld [vmem:[%s1814 + $0xc] sm:$0xf]
    %v1819 = vld [vmem:[%s1814 + $0x10] sm:$0xf]
    %v1820 = vld [vmem:[%s1814 + $0x14] sm:$0xf]
    %v1821 = vld [vmem:[%s1814 + $0x18] sm:$0xf]
    %v1822 = vld [vmem:[%s1814 + $0x1c] sm:$0xf]
    %v1823 = vld [vmem:[%s1814 + $0x20] sm:$0xf]
    %v1824 = vld [vmem:[%s1814 + $0x24] sm:$0xf]
    %v1825 = vld [vmem:[%s1814 + $0x28] sm:$0xf]
    %v1826 = vld [vmem:[%s1814 + $0x2c] sm:$0xf]
    %v1827 = vld [vmem:[%s1814 + $0x30] sm:$0xf]
    %v1828 = vld [vmem:[%s1814 + $0x34] sm:$0xf]
    %v1829 = vld [vmem:[%s1814 + $0x38] sm:$0xf]
    %v1830 = vld [vmem:[%s1814 + $0x3c] sm:$0xf]
    %v1833 = vunpack.c.l.b16 %v1790
    %v1834 = vunpack.c.l.b16 %v1791
    %v1835 = vpack.c.b16 %v1834, %v1833
    %v1853 = vunpack.c.l.b16 %v1815
    %v1854 = vunpack.c.l.b16 %v1816
    %v1855 = vunpack.c.l.b16 %v1817
    %v1856 = vunpack.c.l.b16 %v1818
    %v1857 = vunpack.c.l.b16 %v1819
    %v1858 = vunpack.c.l.b16 %v1820
    %v1859 = vunpack.c.l.b16 %v1821
    %v1860 = vunpack.c.l.b16 %v1822
    %v1861 = vunpack.c.l.b16 %v1823
    %v1862 = vunpack.c.l.b16 %v1824
    %v1863 = vunpack.c.l.b16 %v1825
    %v1864 = vunpack.c.l.b16 %v1826
    %v1865 = vunpack.c.l.b16 %v1827
    %v1866 = vunpack.c.l.b16 %v1828
    %v1867 = vunpack.c.l.b16 %v1829
    %v1868 = vunpack.c.l.b16 %v1830
    %v1869 = vpack.c.b16 %v1854, %v1853
    %v1870 = vpack.c.b16 %v1856, %v1855
    %v1871 = vpack.c.b16 %v1858, %v1857
    %v1872 = vpack.c.b16 %v1860, %v1859
    %v1873 = vpack.c.b16 %v1862, %v1861
    %v1874 = vpack.c.b16 %v1864, %v1863
    %v1875 = vpack.c.b16 %v1866, %v1865
    %v1876 = vpack.c.b16 %v1868, %v1867
    %1885 = vmatpush.bf16.msra.mxu0 %v1876
    %1886 = vmatpush.bf16.msra.mxu0 %v1875
    %1887 = vmatpush.bf16.msra.mxu0 %v1874
    %1888 = vmatpush.bf16.msra.mxu0 %v1873
    %1889 = vmatpush.bf16.msra.mxu0 %v1872
    %1890 = vmatpush.bf16.msra.mxu0 %v1871
    %1891 = vmatpush.bf16.msra.mxu0 %v1870
    %1892 = vmatpush.bf16.msra.mxu0 %v1869
    %1893 = vmatmul.bf16.gmra.mxu0 %v1835
    %v1894 = vpop.f32.mrf.mxu0
    %v1895 = vadd.f32 0.0, %v1894
    %v1896 = vpop.f32.mrf.mxu0
    %v1897 = vadd.f32 0.0, %v1896
    %1898 = vdwg.mxu0
    %v1901 = vunpack.c.l.b16 %v1788
    %v1902 = vunpack.c.l.b16 %v1789
    %v1903 = vpack.c.b16 %v1902, %v1901
    %v1921 = vunpack.c.l.b16 %v1798
    %v1922 = vunpack.c.l.b16 %v1799
    %v1923 = vunpack.c.l.b16 %v1800
    %v1924 = vunpack.c.l.b16 %v1801
    %v1925 = vunpack.c.l.b16 %v1802
    %v1926 = vunpack.c.l.b16 %v1803
    %v1927 = vunpack.c.l.b16 %v1804
    %v1928 = vunpack.c.l.b16 %v1805
    %v1929 = vunpack.c.l.b16 %v1806
    %v1930 = vunpack.c.l.b16 %v1807
    %v1931 = vunpack.c.l.b16 %v1808
    %v1932 = vunpack.c.l.b16 %v1809
    %v1933 = vunpack.c.l.b16 %v1810
    %v1934 = vunpack.c.l.b16 %v1811
    %v1935 = vunpack.c.l.b16 %v1812
    %v1936 = vunpack.c.l.b16 %v1813
    %v1937 = vpack.c.b16 %v1922, %v1921
    %v1938 = vpack.c.b16 %v1924, %v1923
    %v1939 = vpack.c.b16 %v1926, %v1925
    %v1940 = vpack.c.b16 %v1928, %v1927
    %v1941 = vpack.c.b16 %v1930, %v1929
    %v1942 = vpack.c.b16 %v1932, %v1931
    %v1943 = vpack.c.b16 %v1934, %v1933
    %v1944 = vpack.c.b16 %v1936, %v1935
    %1953 = vmatpush.bf16.msra.mxu0 %v1944
    %1954 = vmatpush.bf16.msra.mxu0 %v1943
    %1955 = vmatpush.bf16.msra.mxu0 %v1942
    %1956 = vmatpush.bf16.msra.mxu0 %v1941
    %1957 = vmatpush.bf16.msra.mxu0 %v1940
    %1958 = vmatpush.bf16.msra.mxu0 %v1939
    %1959 = vmatpush.bf16.msra.mxu0 %v1938
    %1960 = vmatpush.bf16.msra.mxu0 %v1937
    %1961 = vmatmul.bf16.gmra.mxu0 %v1903
    %v1962 = vpop.f32.mrf.mxu0
    %v1963 = vadd.f32 %v1895, %v1962
    %v1964 = vpop.f32.mrf.mxu0
    %v1965 = vadd.f32 %v1897, %v1964
    %1966 = vdwg.mxu0
    %s1967 = scalar_lea.vmem %s5, 128
    %v1968 = vld [vmem:[%s1967] sm:$0xf]
    %v1969 = vld [vmem:[%s1967 + $0x4] sm:$0xf]
    %v1970 = vld [vmem:[%s1967 + $0x8] sm:$0xf]
    %v1971 = vld [vmem:[%s1967 + $0xc] sm:$0xf]
    %v1972 = vld [vmem:[%s1967 + $0x10] sm:$0xf]
    %v1973 = vld [vmem:[%s1967 + $0x14] sm:$0xf]
    %v1974 = vld [vmem:[%s1967 + $0x18] sm:$0xf]
    %v1975 = vld [vmem:[%s1967 + $0x1c] sm:$0xf]
    %v1976 = vld [vmem:[%s1967 + $0x20] sm:$0xf]
    %v1977 = vld [vmem:[%s1967 + $0x24] sm:$0xf]
    %v1978 = vld [vmem:[%s1967 + $0x28] sm:$0xf]
    %v1979 = vld [vmem:[%s1967 + $0x2c] sm:$0xf]
    %v1980 = vld [vmem:[%s1967 + $0x30] sm:$0xf]
    %v1981 = vld [vmem:[%s1967 + $0x34] sm:$0xf]
    %v1982 = vld [vmem:[%s1967 + $0x38] sm:$0xf]
    %v1983 = vld [vmem:[%s1967 + $0x3c] sm:$0xf]
    %v1986 = vunpack.c.l.b16 %v1792
    %v1987 = vunpack.c.l.b16 %v1793
    %v1988 = vpack.c.b16 %v1987, %v1986
    %v2006 = vunpack.c.l.b16 %v1968
    %v2007 = vunpack.c.l.b16 %v1969
    %v2008 = vunpack.c.l.b16 %v1970
    %v2009 = vunpack.c.l.b16 %v1971
    %v2010 = vunpack.c.l.b16 %v1972
    %v2011 = vunpack.c.l.b16 %v1973
    %v2012 = vunpack.c.l.b16 %v1974
    %v2013 = vunpack.c.l.b16 %v1975
    %v2014 = vunpack.c.l.b16 %v1976
    %v2015 = vunpack.c.l.b16 %v1977
    %v2016 = vunpack.c.l.b16 %v1978
    %v2017 = vunpack.c.l.b16 %v1979
    %v2018 = vunpack.c.l.b16 %v1980
    %v2019 = vunpack.c.l.b16 %v1981
    %v2020 = vunpack.c.l.b16 %v1982
    %v2021 = vunpack.c.l.b16 %v1983
    %v2022 = vpack.c.b16 %v2007, %v2006
    %v2023 = vpack.c.b16 %v2009, %v2008
    %v2024 = vpack.c.b16 %v2011, %v2010
    %v2025 = vpack.c.b16 %v2013, %v2012
    %v2026 = vpack.c.b16 %v2015, %v2014
    %v2027 = vpack.c.b16 %v2017, %v2016
    %v2028 = vpack.c.b16 %v2019, %v2018
    %v2029 = vpack.c.b16 %v2021, %v2020
    %2038 = vmatpush.bf16.msra.mxu0 %v2029
    %2039 = vmatpush.bf16.msra.mxu0 %v2028
    %2040 = vmatpush.bf16.msra.mxu0 %v2027
    %2041 = vmatpush.bf16.msra.mxu0 %v2026
    %2042 = vmatpush.bf16.msra.mxu0 %v2025
    %2043 = vmatpush.bf16.msra.mxu0 %v2024
    %2044 = vmatpush.bf16.msra.mxu0 %v2023
    %2045 = vmatpush.bf16.msra.mxu0 %v2022
    %2046 = vmatmul.bf16.gmra.mxu0 %v1988
    %v2047 = vpop.f32.mrf.mxu0
    %v2048 = vadd.f32 0.0, %v2047
    %v2049 = vpop.f32.mrf.mxu0
    %v2050 = vadd.f32 0.0, %v2049
    %2051 = vdwg.mxu0
    %v2052 = vadd.f32 %v1963, %v2048
    %v2053 = vadd.f32 %v1965, %v2050
    %s2054 = scalar_lea.vmem %s5, 192
    %v2055 = vld [vmem:[%s2054] sm:$0xf]
    %v2056 = vld [vmem:[%s2054 + $0x4] sm:$0xf]
    %v2057 = vld [vmem:[%s2054 + $0x8] sm:$0xf]
    %v2058 = vld [vmem:[%s2054 + $0xc] sm:$0xf]
    %v2059 = vld [vmem:[%s2054 + $0x10] sm:$0xf]
    %v2060 = vld [vmem:[%s2054 + $0x14] sm:$0xf]
    %v2061 = vld [vmem:[%s2054 + $0x18] sm:$0xf]
    %v2062 = vld [vmem:[%s2054 + $0x1c] sm:$0xf]
    %v2063 = vld [vmem:[%s2054 + $0x20] sm:$0xf]
    %v2064 = vld [vmem:[%s2054 + $0x24] sm:$0xf]
    %v2065 = vld [vmem:[%s2054 + $0x28] sm:$0xf]
    %v2066 = vld [vmem:[%s2054 + $0x2c] sm:$0xf]
    %v2067 = vld [vmem:[%s2054 + $0x30] sm:$0xf]
    %v2068 = vld [vmem:[%s2054 + $0x34] sm:$0xf]
    %v2069 = vld [vmem:[%s2054 + $0x38] sm:$0xf]
    %v2070 = vld [vmem:[%s2054 + $0x3c] sm:$0xf]
    %v2073 = vunpack.c.l.b16 %v1794
    %v2074 = vunpack.c.l.b16 %v1795
    %v2075 = vpack.c.b16 %v2074, %v2073
    %v2093 = vunpack.c.l.b16 %v2055
    %v2094 = vunpack.c.l.b16 %v2056
    %v2095 = vunpack.c.l.b16 %v2057
    %v2096 = vunpack.c.l.b16 %v2058
    %v2097 = vunpack.c.l.b16 %v2059
    %v2098 = vunpack.c.l.b16 %v2060
    %v2099 = vunpack.c.l.b16 %v2061
    %v2100 = vunpack.c.l.b16 %v2062
    %v2101 = vunpack.c.l.b16 %v2063
    %v2102 = vunpack.c.l.b16 %v2064
    %v2103 = vunpack.c.l.b16 %v2065
    %v2104 = vunpack.c.l.b16 %v2066
    %v2105 = vunpack.c.l.b16 %v2067
    %v2106 = vunpack.c.l.b16 %v2068
    %v2107 = vunpack.c.l.b16 %v2069
    %v2108 = vunpack.c.l.b16 %v2070
    %v2109 = vpack.c.b16 %v2094, %v2093
    %v2110 = vpack.c.b16 %v2096, %v2095
    %v2111 = vpack.c.b16 %v2098, %v2097
    %v2112 = vpack.c.b16 %v2100, %v2099
    %v2113 = vpack.c.b16 %v2102, %v2101
    %v2114 = vpack.c.b16 %v2104, %v2103
    %v2115 = vpack.c.b16 %v2106, %v2105
    %v2116 = vpack.c.b16 %v2108, %v2107
    %2125 = vmatpush.bf16.msra.mxu0 %v2116
    %2126 = vmatpush.bf16.msra.mxu0 %v2115
    %2127 = vmatpush.bf16.msra.mxu0 %v2114
    %2128 = vmatpush.bf16.msra.mxu0 %v2113
    %2129 = vmatpush.bf16.msra.mxu0 %v2112
    %2130 = vmatpush.bf16.msra.mxu0 %v2111
    %2131 = vmatpush.bf16.msra.mxu0 %v2110
    %2132 = vmatpush.bf16.msra.mxu0 %v2109
    %2133 = vmatmul.bf16.gmra.mxu0 %v2075
    %v2134 = vpop.f32.mrf.mxu0
    %v2135 = vadd.f32 0.0, %v2134
    %v2136 = vpop.f32.mrf.mxu0
    %v2137 = vadd.f32 0.0, %v2136
    %2138 = vdwg.mxu0
    %v2139 = vadd.f32 %v2052, %v2135
    %v2140 = vadd.f32 %v2053, %v2137
    %s2141 = scalar_lea.vmem %s5, 256
    %v2142 = vld [vmem:[%s2141] sm:$0xf]
    %v2143 = vld [vmem:[%s2141 + $0x4] sm:$0xf]
    %v2144 = vld [vmem:[%s2141 + $0x8] sm:$0xf]
    %v2145 = vld [vmem:[%s2141 + $0xc] sm:$0xf]
    %v2146 = vld [vmem:[%s2141 + $0x10] sm:$0xf]
    %v2147 = vld [vmem:[%s2141 + $0x14] sm:$0xf]
    %v2148 = vld [vmem:[%s2141 + $0x18] sm:$0xf]
    %v2149 = vld [vmem:[%s2141 + $0x1c] sm:$0xf]
    %v2150 = vld [vmem:[%s2141 + $0x20] sm:$0xf]
    %v2151 = vld [vmem:[%s2141 + $0x24] sm:$0xf]
    %v2152 = vld [vmem:[%s2141 + $0x28] sm:$0xf]
    %v2153 = vld [vmem:[%s2141 + $0x2c] sm:$0xf]
    %v2154 = vld [vmem:[%s2141 + $0x30] sm:$0xf]
    %v2155 = vld [vmem:[%s2141 + $0x34] sm:$0xf]
    %v2156 = vld [vmem:[%s2141 + $0x38] sm:$0xf]
    %v2157 = vld [vmem:[%s2141 + $0x3c] sm:$0xf]
    %v2160 = vunpack.c.l.b16 %v1796
    %v2161 = vunpack.c.l.b16 %v1797
    %v2162 = vpack.c.b16 %v2161, %v2160
    %v2180 = vunpack.c.l.b16 %v2142
    %v2181 = vunpack.c.l.b16 %v2143
    %v2182 = vunpack.c.l.b16 %v2144
    %v2183 = vunpack.c.l.b16 %v2145
    %v2184 = vunpack.c.l.b16 %v2146
    %v2185 = vunpack.c.l.b16 %v2147
    %v2186 = vunpack.c.l.b16 %v2148
    %v2187 = vunpack.c.l.b16 %v2149
    %v2188 = vunpack.c.l.b16 %v2150
    %v2189 = vunpack.c.l.b16 %v2151
    %v2190 = vunpack.c.l.b16 %v2152
    %v2191 = vunpack.c.l.b16 %v2153
    %v2192 = vunpack.c.l.b16 %v2154
    %v2193 = vunpack.c.l.b16 %v2155
    %v2194 = vunpack.c.l.b16 %v2156
    %v2195 = vunpack.c.l.b16 %v2157
    %v2196 = vpack.c.b16 %v2181, %v2180
    %v2197 = vpack.c.b16 %v2183, %v2182
    %v2198 = vpack.c.b16 %v2185, %v2184
    %v2199 = vpack.c.b16 %v2187, %v2186
    %v2200 = vpack.c.b16 %v2189, %v2188
    %v2201 = vpack.c.b16 %v2191, %v2190
    %v2202 = vpack.c.b16 %v2193, %v2192
    %v2203 = vpack.c.b16 %v2195, %v2194
    %2212 = vmatpush.bf16.msra.mxu0 %v2203
    %2213 = vmatpush.bf16.msra.mxu0 %v2202
    %2214 = vmatpush.bf16.msra.mxu0 %v2201
    %2215 = vmatpush.bf16.msra.mxu0 %v2200
    %2216 = vmatpush.bf16.msra.mxu0 %v2199
    %2217 = vmatpush.bf16.msra.mxu0 %v2198
    %2218 = vmatpush.bf16.msra.mxu0 %v2197
    %2219 = vmatpush.bf16.msra.mxu0 %v2196
    %2220 = vmatmul.bf16.gmra.mxu0 %v2162
    %v2221 = vpop.f32.mrf.mxu0
    %v2222 = vadd.f32 0.0, %v2221
    %v2223 = vpop.f32.mrf.mxu0
    %v2224 = vadd.f32 0.0, %v2223
    %2225 = vdwg.mxu0
    %v2226 = vadd.f32 %v2139, %v2222
    %v2227 = vadd.f32 %v2140, %v2224
    %v2228 = vld [vmem:[%s6] sm:$0x1]
    %v2230 = vperm.slane %v2228, 0
    %v2232 = vadd.f32 %v2226, %v2230
    %v2233 = vadd.f32 %v2227, %v2230
    %v2234 = vmax.f32 %v2232, 0.0
    %v2235 = vmax.f32 %v2233, 0.0
    %v2236 = vpack.c.bf16 %v2235, %v2234
    %v2237 = vld [vmem:[#allocation5] sm:$0xf]
    %v2238 = vld [vmem:[#allocation5 + $0x4] sm:$0xf]
    %v2239 = vld [vmem:[#allocation5 + $0x8] sm:$0xf]
    %v2240 = vld [vmem:[#allocation5 + $0xc] sm:$0xf]
    %v2241 = vld [vmem:[#allocation5 + $0x10] sm:$0xf]
    %v2242 = vld [vmem:[#allocation5 + $0x14] sm:$0xf]
    %v2243 = vld [vmem:[#allocation5 + $0x18] sm:$0xf]
    %v2244 = vld [vmem:[#allocation5 + $0x1c] sm:$0xf]
    %v2245 = vld [vmem:[%s8] sm:$0x1]
    %v2247 = vperm.slane %v2245, 0
    %v2257 = vunpack.c.l.b16 %v2237
    %v2258 = vunpack.c.l.b16 %v2238
    %v2259 = vunpack.c.l.b16 %v2239
    %v2260 = vunpack.c.l.b16 %v2240
    %v2261 = vunpack.c.l.b16 %v2241
    %v2262 = vunpack.c.l.b16 %v2242
    %v2263 = vunpack.c.l.b16 %v2243
    %v2264 = vunpack.c.l.b16 %v2244
    %v2265 = vpack.c.b16 %v2258, %v2257
    %v2266 = vpack.c.b16 %v2260, %v2259
    %v2267 = vpack.c.b16 %v2262, %v2261
    %v2268 = vpack.c.b16 %v2264, %v2263
    %vm2273 = vcmask 523264
    %v2275 = vsel %vm2273, %v2236, 0
    %2277 = vmatpush.bf16.msra.mxu0 0
    %2278 = vmatpush.bf16.msra.mxu0 0
    %2279 = vmatpush.bf16.msra.mxu0 0
    %2280 = vmatpush.bf16.msra.mxu0 0
    %2281 = vmatpush.bf16.msra.mxu0 %v2268
    %2282 = vmatpush.bf16.msra.mxu0 %v2267
    %2283 = vmatpush.bf16.msra.mxu0 %v2266
    %2284 = vmatpush.bf16.msra.mxu0 %v2265
    %2285 = vmatmul.bf16.gmra.mxu0 %v2275
    %v2286 = vpop.f32.mrf.mxu0
    %v2287 = vadd.f32 %v2247, %v2286
    %v2288 = vpop.f32.mrf.mxu0
    %v2289 = vadd.f32 %v2247, %v2288
    %2290 = vdwg.mxu0
    %2291 = vmax.xlane.f32.xlu0 %v2287
    %v2292 = vpop.xlane.xlu0 %2291
    %2293 = vmax.xlane.f32.xlu0 %v2289
    %v2294 = vpop.xlane.xlu0 %2293
    %v2295 = vsub.f32 %v2287, %v2292
    %v2296 = vsub.f32 %v2289, %v2294
    %v2297 = vmul.f32 %v2295, 1.442695
    %v2298 = vpow.pop %v2297
    %v2299 = vmul.f32 %v2296, 1.442695
    %v2300 = vpow.pop %v2299
    %2301 = vadd.xlane.f32.xlu0 %v2298
    %v2302 = vpop.xlane.xlu0 %2301
    %2303 = vadd.xlane.f32.xlu0 %v2300
    %v2304 = vpop.xlane.xlu0 %2303
    %v2305 = vlog2.pop %v2302
    %v2306 = vmul.f32 %v2305, 0.6931472
    %v2307 = vlog2.pop %v2304
    %v2308 = vmul.f32 %v2307, 0.6931472
    %v2309 = vsub.f32 %v2295, %v2306
    %v2310 = vsub.f32 %v2296, %v2308
    %2311 = vst [vmem:[#allocation7] sm:$0xff] %v2309
    %2312 = vst [vmem:[#allocation7 + $0x8] sm:$0xff] %v2310
    // Predicated region
    $region46: #{tpu_custom_call.1} parent=1 // pred_check
      _
    $region47: #{tpu_custom_call.1} parent=1 // pred_check_branch
      %2314 = sbr.rel (0) target = $region49
    $region48: #{tpu_custom_call.1} parent=1 // pred_region
      %2316 = vsyncadd [#allocation4], 0
      %s2317 = sshll.u32 [#allocation7], 4
      %s2318 = int_to_ptr.vmem [resolvable:$true] %s2317
      %s2319 = sshll.u32 %s9, 4
      %s2320 = int_to_ptr.hbm [resolvable:$true] %s2319
      %2325 = dma.vmem_to_hbm [thread:$0]  %s2318, 256, %s2320, [#allocation4], 128, 128, 8
    $region49: #{tpu_custom_call.1} parent=1 // pred_fallthru
      _
    // Predicated region
    $region50: #{tpu_custom_call.1} parent=1 // pred_check
      _
    $region51: #{tpu_custom_call.1} parent=1 // pred_check_branch
      %2327 = sbr.rel (0) target = $region53
    $region52: #{tpu_custom_call.1} parent=1 // pred_region
      %2329 = dma.done [#allocation4], 256
    $region53: #{tpu_custom_call.1} parent=1 // pred_fallthru
      _
    %2330 = vsyncpa [#allocation3], 1
    %2331 = vsyncpa [#allocation6], 1
    %2332 = vsyncpa [#allocation4], 1

</llo_original>
